<compile_context>
chip_gen: v7x
topology: tpu7x:2x2x1
jax: 0.10.0
libtpu: 0.0.40
codegen_flags: <defaults>
</compile_context>

<pallas_src>
import functools

import numpy as np

import jax
import jax.numpy as jnp
from jax.experimental import pallas as pl
from jax.experimental.pallas import tpu as pltpu


# ---------------------------------------------------------------------------
# Fused attention kernel: one batch element per grid step
# ---------------------------------------------------------------------------
def _fused_attention_kernel(x_ref, wqkv_ref, wproj_ref, bproj_ref, o_ref,
                            *, num_heads, head_dim, scale):
    # x_ref:    (N, C)  f32   (block of the input)
    # wqkv_ref: (C, 3C) bf16  (VMEM-resident, constant index map)
    # wproj_ref:(C, C)  bf16  (VMEM-resident, constant index map)
    # bproj_ref:(1, C)  f32
    # o_ref:    (N, C)  f32   (final module output, lane-dense single store)
    C = num_heads * head_dim

    x = x_ref[...].astype(jnp.bfloat16)                                   # (N, C)

    # qkv projection on the MXU, f32 accumulation. Layout of the 3C lanes is
    # [q_h0..q_h{H-1} | k_h0.. | v_h0..], matching torch's reshape(B,N,3,H,D).
    qkv = jnp.dot(x, wqkv_ref[...], preferred_element_type=jnp.float32)   # (N, 3C)

    o_heads = []
    for h in range(num_heads):
        lo = h * head_dim
        # Lane-contiguous windows of the (N, 3C) value -> already in the
        # (sublane=N, lane=D) layout the MXU needs; no relayout copies.
        q = qkv[:, lo:lo + head_dim] * scale                # scale folded in f32
        k = qkv[:, C + lo:C + lo + head_dim]
        v = qkv[:, 2 * C + lo:2 * C + lo + head_dim]

        # scores = q @ k^T  (bf16 MXU feeds, f32 accumulation)
        s = jax.lax.dot_general(
            q.astype(jnp.bfloat16), k.astype(jnp.bfloat16),
            (((1,), (1,)), ((), ())),
            preferred_element_type=jnp.float32)             # (N, N) f32

        # softmax in f32 (v5e-safe); numerically-stable max subtraction
        s = s - jnp.max(s, axis=-1, keepdims=True)
        p = jnp.exp(s)
        l = jnp.sum(p, axis=-1, keepdims=True)

        o_h = jnp.dot(p.astype(jnp.bfloat16), v.astype(jnp.bfloat16),
                      preferred_element_type=jnp.float32)   # (N, D) f32
        # EUP approximate reciprocal (deliberate ~1e-3-level deviation from an
        # exact divide; free bundle slot vs. the VPU).
        o_heads.append(o_h * pl.reciprocal(l, approx=True))

    # Merge heads into one lane-dense (N, C) value, then a single full-depth
    # output projection + bias, and one lane-dense store.
    o_merged = jnp.concatenate(o_heads, axis=-1)                           # (N, C)
    out = jnp.dot(o_merged.astype(jnp.bfloat16), wproj_ref[...],
                  preferred_element_type=jnp.float32)                      # (N, C)
    out = out + bproj_ref[...]
    o_ref[...] = out.astype(o_ref.dtype)


# ---------------------------------------------------------------------------
# Forward pass (single pallas_call)
# ---------------------------------------------------------------------------
def attention_forward(x, params, num_heads):
    """x: (B, N, C) float32. params: w_qkv (C,3C), w_proj (C,C), b_proj (1,C)
    stored as (in_features, out_features), i.e. W_jax = W_torch.T."""
    B, N, C = x.shape
    head_dim = C // num_heads
    scale = head_dim ** (-0.5)

    # Pre-cast weights to bf16 once in the wrapper (halves weight DMA + resident
    # VMEM; removes per-tile casts in the kernel). Bias stays f32.
    w_qkv = params["w_qkv"].astype(jnp.bfloat16)
    w_proj = params["w_proj"].astype(jnp.bfloat16)
    b_proj = params["b_proj"].astype(jnp.float32)

    kernel = functools.partial(
        _fused_attention_kernel,
        num_heads=num_heads, head_dim=head_dim, scale=scale)

    flops = (2 * B * N * C * 3 * C                      # qkv projection
             + 4 * B * num_heads * N * N * head_dim     # q@k^T + p@v
             + 2 * B * N * C * C)                       # output projection
    bytes_accessed = (B * N * C * x.dtype.itemsize          # x in
                      + C * 3 * C * 2 + C * C * 2 + C * 4   # bf16 weights + bias
                      + B * N * C * x.dtype.itemsize)       # out

    return pl.pallas_call(
        kernel,
        out_shape=jax.ShapeDtypeStruct((B, N, C), x.dtype),
        grid=(B,),
        in_specs=[
            pl.BlockSpec((None, N, C), lambda b: (b, 0, 0)),   # x, lane-dense block
            pl.BlockSpec((C, 3 * C), lambda b: (0, 0)),        # w_qkv, resident
            pl.BlockSpec((C, C), lambda b: (0, 0)),            # w_proj, resident
            pl.BlockSpec((1, C), lambda b: (0, 0)),            # b_proj, resident
        ],
        out_specs=pl.BlockSpec((None, N, C), lambda b: (b, 0, 0)),
        compiler_params=pltpu.CompilerParams(
            dimension_semantics=("parallel",)),
        cost_estimate=pl.CostEstimate(
            flops=flops,
            transcendentals=B * num_heads * N * N,
            bytes_accessed=bytes_accessed),
    )(x, w_qkv, w_proj, b_proj)


# ---------------------------------------------------------------------------
# Deterministic parameter init (weights stored transposed vs. torch Linear)
# ---------------------------------------------------------------------------
def init_params(key, dim):
    k1, k2, k3 = jax.random.split(key, 3)
    w_qkv = jax.random.normal(k1, (dim, 3 * dim), jnp.float32) * 0.02
    w_proj = jax.random.normal(k2, (dim, dim), jnp.float32) * 0.02
    b_proj = jax.random.normal(k3, (1, dim), jnp.float32) * 0.02
    return {"w_qkv": w_qkv, "w_proj": w_proj, "b_proj": b_proj}


if __name__ == "__main__":
    B, N, C = 2, 8, 32
    num_heads = 8

    key = jax.random.PRNGKey(0)
    kx, kp = jax.random.split(key)
    x = jax.random.normal(kx, (B, N, C), jnp.float32)
    params = init_params(kp, C)

    fwd = jax.jit(functools.partial(attention_forward, num_heads=num_heads))
    out = fwd(x, params)
    jax.block_until_ready(out)

    assert out.shape == (B, N, C) and out.dtype == jnp.float32

    # pure-JAX f32 reference (kernel uses bf16 MXU feeds -> loosened tolerance)
    head_dim = C // num_heads
    scale = head_dim ** (-0.5)
    qkv_ref = (x.reshape(B * N, C) @ params["w_qkv"]).reshape(B, N, 3, num_heads, head_dim)
    qkv_ref = jnp.transpose(qkv_ref, (2, 0, 3, 1, 4))
    qr, kr, vr = qkv_ref[0], qkv_ref[1], qkv_ref[2]
    attn = jax.nn.softmax(jnp.einsum("bhnd,bhmd->bhnm", qr, kr) * scale, axis=-1)
    o_ref = jnp.einsum("bhnm,bhmd->bhnd", attn, vr)
    o_ref = jnp.transpose(o_ref, (0, 2, 1, 3)).reshape(B * N, C)
    o_ref = (o_ref @ params["w_proj"] + params["b_proj"]).reshape(B, N, C)

    max_err = float(jnp.max(jnp.abs(out - o_ref)))
    assert jnp.allclose(out, o_ref, atol=5e-3, rtol=5e-2), max_err

    print("KERNEL_OK")
</pallas_src>

<mosaic_0001>
module attributes {stable_mosaic.version = 11 : i64} {
  func.func @_fused_attention_kernel(%arg0: i32, %arg1: memref<1x8x32xf32, #tpu.memory_space<vmem>>, %arg2: memref<32x96xbf16, #tpu.memory_space<vmem>>, %arg3: memref<32x32xbf16, #tpu.memory_space<vmem>>, %arg4: memref<1x32xf32, #tpu.memory_space<vmem>>, %arg5: memref<1x8x32xf32, #tpu.memory_space<vmem>>) attributes {dimension_semantics = [#tpu.dimension_semantics<parallel>], iteration_bounds = array<i64: 2>, scalar_prefetch = 0 : i64, scratch_operands = 0 : i64, tpu.core_type = #tpu.core_type<tc>, window_params = [{transform_indices = @transform_0, window_bounds = array<i64: 1, 8, 32>}, {pipeline_mode = #tpu.pipeline_mode<synchronous>, transform_indices = @transform_1, window_bounds = array<i64: 32, 96>}, {pipeline_mode = #tpu.pipeline_mode<synchronous>, transform_indices = @transform_2, window_bounds = array<i64: 32, 32>}, {pipeline_mode = #tpu.pipeline_mode<synchronous>, transform_indices = @transform_3, window_bounds = array<i64: 1, 32>}, {transform_indices = @transform_4, window_bounds = array<i64: 1, 8, 32>}]} {
    %c0 = arith.constant 0 : index
    %c0_0 = arith.constant 0 : index
    %c0_1 = arith.constant 0 : index
    %0 = vector.load %arg1[%c0, %c0_0, %c0_1] : memref<1x8x32xf32, #tpu.memory_space<vmem>>, vector<1x8x32xf32>
    %1 = vector.shape_cast %0 : vector<1x8x32xf32> to vector<8x32xf32>
    %2 = arith.truncf %1 : vector<8x32xf32> to vector<8x32xbf16>
    %c0_2 = arith.constant 0 : index
    %c0_3 = arith.constant 0 : index
    %3 = vector.load %arg2[%c0_2, %c0_3] : memref<32x96xbf16, #tpu.memory_space<vmem>>, vector<32x96xbf16>
    %cst = arith.constant dense<0.000000e+00> : vector<8x96xf32>
    %4 = tpu.matmul %2, %3, %cst {dimension_numbers = #tpu.dot_dimension_numbers<[1], [0], [0], [1], [0, 0, 1, 1], [], []>} : vector<8x32xbf16>, vector<32x96xbf16>, vector<8x96xf32> -> vector<8x96xf32>
    %5 = vector.extract_strided_slice %4 {offsets = [0, 0], sizes = [8, 4], strides = [1, 1]} : vector<8x96xf32> to vector<8x4xf32>
    %cst_4 = arith.constant 5.000000e-01 : f32
    %6 = vector.broadcast %cst_4 : f32 to vector<8x4xf32>
    %7 = arith.mulf %5, %6 : vector<8x4xf32>
    %8 = vector.extract_strided_slice %4 {offsets = [0, 32], sizes = [8, 4], strides = [1, 1]} : vector<8x96xf32> to vector<8x4xf32>
    %9 = vector.extract_strided_slice %4 {offsets = [0, 64], sizes = [8, 4], strides = [1, 1]} : vector<8x96xf32> to vector<8x4xf32>
    %10 = arith.truncf %7 : vector<8x4xf32> to vector<8x4xbf16>
    %11 = arith.truncf %8 : vector<8x4xf32> to vector<8x4xbf16>
    %cst_5 = arith.constant dense<0.000000e+00> : vector<8x8xf32>
    %12 = tpu.matmul %10, %11, %cst_5 {dimension_numbers = #tpu.dot_dimension_numbers<[1], [1], [0], [0], [0, 0, 1, 0], [], []>} : vector<8x4xbf16>, vector<8x4xbf16>, vector<8x8xf32> -> vector<8x8xf32>
    %cst_6 = arith.constant dense<0xFF800000> : vector<8xf32>
    %13 = vector.multi_reduction <maximumf>, %12, %cst_6 [1] : vector<8x8xf32> to vector<8xf32>
    %14 = vector.shape_cast %13 : vector<8xf32> to vector<8x1xf32>
    %15 = vector.broadcast %14 : vector<8x1xf32> to vector<8x8xf32>
    %16 = arith.subf %12, %15 : vector<8x8xf32>
    %17 = math.exp %16 : vector<8x8xf32>
    %cst_7 = arith.constant dense<0.000000e+00> : vector<8xf32>
    %18 = vector.multi_reduction <add>, %17, %cst_7 [1] : vector<8x8xf32> to vector<8xf32>
    %19 = vector.shape_cast %18 : vector<8xf32> to vector<8x1xf32>
    %20 = arith.truncf %17 : vector<8x8xf32> to vector<8x8xbf16>
    %21 = arith.truncf %9 : vector<8x4xf32> to vector<8x4xbf16>
    %cst_8 = arith.constant dense<0.000000e+00> : vector<8x4xf32>
    %22 = tpu.matmul %20, %21, %cst_8 {dimension_numbers = #tpu.dot_dimension_numbers<[1], [0], [0], [1], [0, 0, 1, 1], [], []>} : vector<8x8xbf16>, vector<8x4xbf16>, vector<8x4xf32> -> vector<8x4xf32>
    %23 = tpu.reciprocal %19 {approx = true} : vector<8x1xf32> -> vector<8x1xf32>
    %24 = vector.broadcast %23 : vector<8x1xf32> to vector<8x4xf32>
    %25 = arith.mulf %22, %24 : vector<8x4xf32>
    %26 = vector.extract_strided_slice %4 {offsets = [0, 4], sizes = [8, 4], strides = [1, 1]} : vector<8x96xf32> to vector<8x4xf32>
    %cst_9 = arith.constant 5.000000e-01 : f32
    %27 = vector.broadcast %cst_9 : f32 to vector<8x4xf32>
    %28 = arith.mulf %26, %27 : vector<8x4xf32>
    %29 = vector.extract_strided_slice %4 {offsets = [0, 36], sizes = [8, 4], strides = [1, 1]} : vector<8x96xf32> to vector<8x4xf32>
    %30 = vector.extract_strided_slice %4 {offsets = [0, 68], sizes = [8, 4], strides = [1, 1]} : vector<8x96xf32> to vector<8x4xf32>
    %31 = arith.truncf %28 : vector<8x4xf32> to vector<8x4xbf16>
    %32 = arith.truncf %29 : vector<8x4xf32> to vector<8x4xbf16>
    %cst_10 = arith.constant dense<0.000000e+00> : vector<8x8xf32>
    %33 = tpu.matmul %31, %32, %cst_10 {dimension_numbers = #tpu.dot_dimension_numbers<[1], [1], [0], [0], [0, 0, 1, 0], [], []>} : vector<8x4xbf16>, vector<8x4xbf16>, vector<8x8xf32> -> vector<8x8xf32>
    %cst_11 = arith.constant dense<0xFF800000> : vector<8xf32>
    %34 = vector.multi_reduction <maximumf>, %33, %cst_11 [1] : vector<8x8xf32> to vector<8xf32>
    %35 = vector.shape_cast %34 : vector<8xf32> to vector<8x1xf32>
    %36 = vector.broadcast %35 : vector<8x1xf32> to vector<8x8xf32>
    %37 = arith.subf %33, %36 : vector<8x8xf32>
    %38 = math.exp %37 : vector<8x8xf32>
    %cst_12 = arith.constant dense<0.000000e+00> : vector<8xf32>
    %39 = vector.multi_reduction <add>, %38, %cst_12 [1] : vector<8x8xf32> to vector<8xf32>
    %40 = vector.shape_cast %39 : vector<8xf32> to vector<8x1xf32>
    %41 = arith.truncf %38 : vector<8x8xf32> to vector<8x8xbf16>
    %42 = arith.truncf %30 : vector<8x4xf32> to vector<8x4xbf16>
    %cst_13 = arith.constant dense<0.000000e+00> : vector<8x4xf32>
    %43 = tpu.matmul %41, %42, %cst_13 {dimension_numbers = #tpu.dot_dimension_numbers<[1], [0], [0], [1], [0, 0, 1, 1], [], []>} : vector<8x8xbf16>, vector<8x4xbf16>, vector<8x4xf32> -> vector<8x4xf32>
    %44 = tpu.reciprocal %40 {approx = true} : vector<8x1xf32> -> vector<8x1xf32>
    %45 = vector.broadcast %44 : vector<8x1xf32> to vector<8x4xf32>
    %46 = arith.mulf %43, %45 : vector<8x4xf32>
    %47 = vector.extract_strided_slice %4 {offsets = [0, 8], sizes = [8, 4], strides = [1, 1]} : vector<8x96xf32> to vector<8x4xf32>
    %cst_14 = arith.constant 5.000000e-01 : f32
    %48 = vector.broadcast %cst_14 : f32 to vector<8x4xf32>
    %49 = arith.mulf %47, %48 : vector<8x4xf32>
    %50 = vector.extract_strided_slice %4 {offsets = [0, 40], sizes = [8, 4], strides = [1, 1]} : vector<8x96xf32> to vector<8x4xf32>
    %51 = vector.extract_strided_slice %4 {offsets = [0, 72], sizes = [8, 4], strides = [1, 1]} : vector<8x96xf32> to vector<8x4xf32>
    %52 = arith.truncf %49 : vector<8x4xf32> to vector<8x4xbf16>
    %53 = arith.truncf %50 : vector<8x4xf32> to vector<8x4xbf16>
    %cst_15 = arith.constant dense<0.000000e+00> : vector<8x8xf32>
    %54 = tpu.matmul %52, %53, %cst_15 {dimension_numbers = #tpu.dot_dimension_numbers<[1], [1], [0], [0], [0, 0, 1, 0], [], []>} : vector<8x4xbf16>, vector<8x4xbf16>, vector<8x8xf32> -> vector<8x8xf32>
    %cst_16 = arith.constant dense<0xFF800000> : vector<8xf32>
    %55 = vector.multi_reduction <maximumf>, %54, %cst_16 [1] : vector<8x8xf32> to vector<8xf32>
    %56 = vector.shape_cast %55 : vector<8xf32> to vector<8x1xf32>
    %57 = vector.broadcast %56 : vector<8x1xf32> to vector<8x8xf32>
    %58 = arith.subf %54, %57 : vector<8x8xf32>
    %59 = math.exp %58 : vector<8x8xf32>
    %cst_17 = arith.constant dense<0.000000e+00> : vector<8xf32>
    %60 = vector.multi_reduction <add>, %59, %cst_17 [1] : vector<8x8xf32> to vector<8xf32>
    %61 = vector.shape_cast %60 : vector<8xf32> to vector<8x1xf32>
    %62 = arith.truncf %59 : vector<8x8xf32> to vector<8x8xbf16>
    %63 = arith.truncf %51 : vector<8x4xf32> to vector<8x4xbf16>
    %cst_18 = arith.constant dense<0.000000e+00> : vector<8x4xf32>
    %64 = tpu.matmul %62, %63, %cst_18 {dimension_numbers = #tpu.dot_dimension_numbers<[1], [0], [0], [1], [0, 0, 1, 1], [], []>} : vector<8x8xbf16>, vector<8x4xbf16>, vector<8x4xf32> -> vector<8x4xf32>
    %65 = tpu.reciprocal %61 {approx = true} : vector<8x1xf32> -> vector<8x1xf32>
    %66 = vector.broadcast %65 : vector<8x1xf32> to vector<8x4xf32>
    %67 = arith.mulf %64, %66 : vector<8x4xf32>
    %68 = vector.extract_strided_slice %4 {offsets = [0, 12], sizes = [8, 4], strides = [1, 1]} : vector<8x96xf32> to vector<8x4xf32>
    %cst_19 = arith.constant 5.000000e-01 : f32
    %69 = vector.broadcast %cst_19 : f32 to vector<8x4xf32>
    %70 = arith.mulf %68, %69 : vector<8x4xf32>
    %71 = vector.extract_strided_slice %4 {offsets = [0, 44], sizes = [8, 4], strides = [1, 1]} : vector<8x96xf32> to vector<8x4xf32>
    %72 = vector.extract_strided_slice %4 {offsets = [0, 76], sizes = [8, 4], strides = [1, 1]} : vector<8x96xf32> to vector<8x4xf32>
    %73 = arith.truncf %70 : vector<8x4xf32> to vector<8x4xbf16>
    %74 = arith.truncf %71 : vector<8x4xf32> to vector<8x4xbf16>
    %cst_20 = arith.constant dense<0.000000e+00> : vector<8x8xf32>
    %75 = tpu.matmul %73, %74, %cst_20 {dimension_numbers = #tpu.dot_dimension_numbers<[1], [1], [0], [0], [0, 0, 1, 0], [], []>} : vector<8x4xbf16>, vector<8x4xbf16>, vector<8x8xf32> -> vector<8x8xf32>
    %cst_21 = arith.constant dense<0xFF800000> : vector<8xf32>
    %76 = vector.multi_reduction <maximumf>, %75, %cst_21 [1] : vector<8x8xf32> to vector<8xf32>
    %77 = vector.shape_cast %76 : vector<8xf32> to vector<8x1xf32>
    %78 = vector.broadcast %77 : vector<8x1xf32> to vector<8x8xf32>
    %79 = arith.subf %75, %78 : vector<8x8xf32>
    %80 = math.exp %79 : vector<8x8xf32>
    %cst_22 = arith.constant dense<0.000000e+00> : vector<8xf32>
    %81 = vector.multi_reduction <add>, %80, %cst_22 [1] : vector<8x8xf32> to vector<8xf32>
    %82 = vector.shape_cast %81 : vector<8xf32> to vector<8x1xf32>
    %83 = arith.truncf %80 : vector<8x8xf32> to vector<8x8xbf16>
    %84 = arith.truncf %72 : vector<8x4xf32> to vector<8x4xbf16>
    %cst_23 = arith.constant dense<0.000000e+00> : vector<8x4xf32>
    %85 = tpu.matmul %83, %84, %cst_23 {dimension_numbers = #tpu.dot_dimension_numbers<[1], [0], [0], [1], [0, 0, 1, 1], [], []>} : vector<8x8xbf16>, vector<8x4xbf16>, vector<8x4xf32> -> vector<8x4xf32>
    %86 = tpu.reciprocal %82 {approx = true} : vector<8x1xf32> -> vector<8x1xf32>
    %87 = vector.broadcast %86 : vector<8x1xf32> to vector<8x4xf32>
    %88 = arith.mulf %85, %87 : vector<8x4xf32>
    %89 = vector.extract_strided_slice %4 {offsets = [0, 16], sizes = [8, 4], strides = [1, 1]} : vector<8x96xf32> to vector<8x4xf32>
    %cst_24 = arith.constant 5.000000e-01 : f32
    %90 = vector.broadcast %cst_24 : f32 to vector<8x4xf32>
    %91 = arith.mulf %89, %90 : vector<8x4xf32>
    %92 = vector.extract_strided_slice %4 {offsets = [0, 48], sizes = [8, 4], strides = [1, 1]} : vector<8x96xf32> to vector<8x4xf32>
    %93 = vector.extract_strided_slice %4 {offsets = [0, 80], sizes = [8, 4], strides = [1, 1]} : vector<8x96xf32> to vector<8x4xf32>
    %94 = arith.truncf %91 : vector<8x4xf32> to vector<8x4xbf16>
    %95 = arith.truncf %92 : vector<8x4xf32> to vector<8x4xbf16>
    %cst_25 = arith.constant dense<0.000000e+00> : vector<8x8xf32>
    %96 = tpu.matmul %94, %95, %cst_25 {dimension_numbers = #tpu.dot_dimension_numbers<[1], [1], [0], [0], [0, 0, 1, 0], [], []>} : vector<8x4xbf16>, vector<8x4xbf16>, vector<8x8xf32> -> vector<8x8xf32>
    %cst_26 = arith.constant dense<0xFF800000> : vector<8xf32>
    %97 = vector.multi_reduction <maximumf>, %96, %cst_26 [1] : vector<8x8xf32> to vector<8xf32>
    %98 = vector.shape_cast %97 : vector<8xf32> to vector<8x1xf32>
    %99 = vector.broadcast %98 : vector<8x1xf32> to vector<8x8xf32>
    %100 = arith.subf %96, %99 : vector<8x8xf32>
    %101 = math.exp %100 : vector<8x8xf32>
    %cst_27 = arith.constant dense<0.000000e+00> : vector<8xf32>
    %102 = vector.multi_reduction <add>, %101, %cst_27 [1] : vector<8x8xf32> to vector<8xf32>
    %103 = vector.shape_cast %102 : vector<8xf32> to vector<8x1xf32>
    %104 = arith.truncf %101 : vector<8x8xf32> to vector<8x8xbf16>
    %105 = arith.truncf %93 : vector<8x4xf32> to vector<8x4xbf16>
    %cst_28 = arith.constant dense<0.000000e+00> : vector<8x4xf32>
    %106 = tpu.matmul %104, %105, %cst_28 {dimension_numbers = #tpu.dot_dimension_numbers<[1], [0], [0], [1], [0, 0, 1, 1], [], []>} : vector<8x8xbf16>, vector<8x4xbf16>, vector<8x4xf32> -> vector<8x4xf32>
    %107 = tpu.reciprocal %103 {approx = true} : vector<8x1xf32> -> vector<8x1xf32>
    %108 = vector.broadcast %107 : vector<8x1xf32> to vector<8x4xf32>
    %109 = arith.mulf %106, %108 : vector<8x4xf32>
    %110 = vector.extract_strided_slice %4 {offsets = [0, 20], sizes = [8, 4], strides = [1, 1]} : vector<8x96xf32> to vector<8x4xf32>
    %cst_29 = arith.constant 5.000000e-01 : f32
    %111 = vector.broadcast %cst_29 : f32 to vector<8x4xf32>
    %112 = arith.mulf %110, %111 : vector<8x4xf32>
    %113 = vector.extract_strided_slice %4 {offsets = [0, 52], sizes = [8, 4], strides = [1, 1]} : vector<8x96xf32> to vector<8x4xf32>
    %114 = vector.extract_strided_slice %4 {offsets = [0, 84], sizes = [8, 4], strides = [1, 1]} : vector<8x96xf32> to vector<8x4xf32>
    %115 = arith.truncf %112 : vector<8x4xf32> to vector<8x4xbf16>
    %116 = arith.truncf %113 : vector<8x4xf32> to vector<8x4xbf16>
    %cst_30 = arith.constant dense<0.000000e+00> : vector<8x8xf32>
    %117 = tpu.matmul %115, %116, %cst_30 {dimension_numbers = #tpu.dot_dimension_numbers<[1], [1], [0], [0], [0, 0, 1, 0], [], []>} : vector<8x4xbf16>, vector<8x4xbf16>, vector<8x8xf32> -> vector<8x8xf32>
    %cst_31 = arith.constant dense<0xFF800000> : vector<8xf32>
    %118 = vector.multi_reduction <maximumf>, %117, %cst_31 [1] : vector<8x8xf32> to vector<8xf32>
    %119 = vector.shape_cast %118 : vector<8xf32> to vector<8x1xf32>
    %120 = vector.broadcast %119 : vector<8x1xf32> to vector<8x8xf32>
    %121 = arith.subf %117, %120 : vector<8x8xf32>
    %122 = math.exp %121 : vector<8x8xf32>
    %cst_32 = arith.constant dense<0.000000e+00> : vector<8xf32>
    %123 = vector.multi_reduction <add>, %122, %cst_32 [1] : vector<8x8xf32> to vector<8xf32>
    %124 = vector.shape_cast %123 : vector<8xf32> to vector<8x1xf32>
    %125 = arith.truncf %122 : vector<8x8xf32> to vector<8x8xbf16>
    %126 = arith.truncf %114 : vector<8x4xf32> to vector<8x4xbf16>
    %cst_33 = arith.constant dense<0.000000e+00> : vector<8x4xf32>
    %127 = tpu.matmul %125, %126, %cst_33 {dimension_numbers = #tpu.dot_dimension_numbers<[1], [0], [0], [1], [0, 0, 1, 1], [], []>} : vector<8x8xbf16>, vector<8x4xbf16>, vector<8x4xf32> -> vector<8x4xf32>
    %128 = tpu.reciprocal %124 {approx = true} : vector<8x1xf32> -> vector<8x1xf32>
    %129 = vector.broadcast %128 : vector<8x1xf32> to vector<8x4xf32>
    %130 = arith.mulf %127, %129 : vector<8x4xf32>
    %131 = vector.extract_strided_slice %4 {offsets = [0, 24], sizes = [8, 4], strides = [1, 1]} : vector<8x96xf32> to vector<8x4xf32>
    %cst_34 = arith.constant 5.000000e-01 : f32
    %132 = vector.broadcast %cst_34 : f32 to vector<8x4xf32>
    %133 = arith.mulf %131, %132 : vector<8x4xf32>
    %134 = vector.extract_strided_slice %4 {offsets = [0, 56], sizes = [8, 4], strides = [1, 1]} : vector<8x96xf32> to vector<8x4xf32>
    %135 = vector.extract_strided_slice %4 {offsets = [0, 88], sizes = [8, 4], strides = [1, 1]} : vector<8x96xf32> to vector<8x4xf32>
    %136 = arith.truncf %133 : vector<8x4xf32> to vector<8x4xbf16>
    %137 = arith.truncf %134 : vector<8x4xf32> to vector<8x4xbf16>
    %cst_35 = arith.constant dense<0.000000e+00> : vector<8x8xf32>
    %138 = tpu.matmul %136, %137, %cst_35 {dimension_numbers = #tpu.dot_dimension_numbers<[1], [1], [0], [0], [0, 0, 1, 0], [], []>} : vector<8x4xbf16>, vector<8x4xbf16>, vector<8x8xf32> -> vector<8x8xf32>
    %cst_36 = arith.constant dense<0xFF800000> : vector<8xf32>
    %139 = vector.multi_reduction <maximumf>, %138, %cst_36 [1] : vector<8x8xf32> to vector<8xf32>
    %140 = vector.shape_cast %139 : vector<8xf32> to vector<8x1xf32>
    %141 = vector.broadcast %140 : vector<8x1xf32> to vector<8x8xf32>
    %142 = arith.subf %138, %141 : vector<8x8xf32>
    %143 = math.exp %142 : vector<8x8xf32>
    %cst_37 = arith.constant dense<0.000000e+00> : vector<8xf32>
    %144 = vector.multi_reduction <add>, %143, %cst_37 [1] : vector<8x8xf32> to vector<8xf32>
    %145 = vector.shape_cast %144 : vector<8xf32> to vector<8x1xf32>
    %146 = arith.truncf %143 : vector<8x8xf32> to vector<8x8xbf16>
    %147 = arith.truncf %135 : vector<8x4xf32> to vector<8x4xbf16>
    %cst_38 = arith.constant dense<0.000000e+00> : vector<8x4xf32>
    %148 = tpu.matmul %146, %147, %cst_38 {dimension_numbers = #tpu.dot_dimension_numbers<[1], [0], [0], [1], [0, 0, 1, 1], [], []>} : vector<8x8xbf16>, vector<8x4xbf16>, vector<8x4xf32> -> vector<8x4xf32>
    %149 = tpu.reciprocal %145 {approx = true} : vector<8x1xf32> -> vector<8x1xf32>
    %150 = vector.broadcast %149 : vector<8x1xf32> to vector<8x4xf32>
    %151 = arith.mulf %148, %150 : vector<8x4xf32>
    %152 = vector.extract_strided_slice %4 {offsets = [0, 28], sizes = [8, 4], strides = [1, 1]} : vector<8x96xf32> to vector<8x4xf32>
    %cst_39 = arith.constant 5.000000e-01 : f32
    %153 = vector.broadcast %cst_39 : f32 to vector<8x4xf32>
    %154 = arith.mulf %152, %153 : vector<8x4xf32>
    %155 = vector.extract_strided_slice %4 {offsets = [0, 60], sizes = [8, 4], strides = [1, 1]} : vector<8x96xf32> to vector<8x4xf32>
    %156 = vector.extract_strided_slice %4 {offsets = [0, 92], sizes = [8, 4], strides = [1, 1]} : vector<8x96xf32> to vector<8x4xf32>
    %157 = arith.truncf %154 : vector<8x4xf32> to vector<8x4xbf16>
    %158 = arith.truncf %155 : vector<8x4xf32> to vector<8x4xbf16>
    %cst_40 = arith.constant dense<0.000000e+00> : vector<8x8xf32>
    %159 = tpu.matmul %157, %158, %cst_40 {dimension_numbers = #tpu.dot_dimension_numbers<[1], [1], [0], [0], [0, 0, 1, 0], [], []>} : vector<8x4xbf16>, vector<8x4xbf16>, vector<8x8xf32> -> vector<8x8xf32>
    %cst_41 = arith.constant dense<0xFF800000> : vector<8xf32>
    %160 = vector.multi_reduction <maximumf>, %159, %cst_41 [1] : vector<8x8xf32> to vector<8xf32>
    %161 = vector.shape_cast %160 : vector<8xf32> to vector<8x1xf32>
    %162 = vector.broadcast %161 : vector<8x1xf32> to vector<8x8xf32>
    %163 = arith.subf %159, %162 : vector<8x8xf32>
    %164 = math.exp %163 : vector<8x8xf32>
    %cst_42 = arith.constant dense<0.000000e+00> : vector<8xf32>
    %165 = vector.multi_reduction <add>, %164, %cst_42 [1] : vector<8x8xf32> to vector<8xf32>
    %166 = vector.shape_cast %165 : vector<8xf32> to vector<8x1xf32>
    %167 = arith.truncf %164 : vector<8x8xf32> to vector<8x8xbf16>
    %168 = arith.truncf %156 : vector<8x4xf32> to vector<8x4xbf16>
    %cst_43 = arith.constant dense<0.000000e+00> : vector<8x4xf32>
    %169 = tpu.matmul %167, %168, %cst_43 {dimension_numbers = #tpu.dot_dimension_numbers<[1], [0], [0], [1], [0, 0, 1, 1], [], []>} : vector<8x8xbf16>, vector<8x4xbf16>, vector<8x4xf32> -> vector<8x4xf32>
    %170 = tpu.reciprocal %166 {approx = true} : vector<8x1xf32> -> vector<8x1xf32>
    %171 = vector.broadcast %170 : vector<8x1xf32> to vector<8x4xf32>
    %172 = arith.mulf %169, %171 : vector<8x4xf32>
    %173 = tpu.concatenate %25, %46, %67, %88, %109, %130, %151, %172 in 1 : vector<8x4xf32>, vector<8x4xf32>, vector<8x4xf32>, vector<8x4xf32>, vector<8x4xf32>, vector<8x4xf32>, vector<8x4xf32>, vector<8x4xf32> -> vector<8x32xf32>
    %174 = arith.truncf %173 : vector<8x32xf32> to vector<8x32xbf16>
    %c0_44 = arith.constant 0 : index
    %c0_45 = arith.constant 0 : index
    %175 = vector.load %arg3[%c0_44, %c0_45] : memref<32x32xbf16, #tpu.memory_space<vmem>>, vector<32x32xbf16>
    %cst_46 = arith.constant dense<0.000000e+00> : vector<8x32xf32>
    %176 = tpu.matmul %174, %175, %cst_46 {dimension_numbers = #tpu.dot_dimension_numbers<[1], [0], [0], [1], [0, 0, 1, 1], [], []>} : vector<8x32xbf16>, vector<32x32xbf16>, vector<8x32xf32> -> vector<8x32xf32>
    %c0_47 = arith.constant 0 : index
    %c0_48 = arith.constant 0 : index
    %177 = vector.load %arg4[%c0_47, %c0_48] : memref<1x32xf32, #tpu.memory_space<vmem>>, vector<1x32xf32>
    %178 = vector.broadcast %177 : vector<1x32xf32> to vector<8x32xf32>
    %179 = arith.addf %176, %178 : vector<8x32xf32>
    %c0_49 = arith.constant 0 : index
    %c0_50 = arith.constant 0 : index
    %c0_51 = arith.constant 0 : index
    %180 = vector.load %arg5[%c0_49, %c0_50, %c0_51] : memref<1x8x32xf32, #tpu.memory_space<vmem>>, vector<1x8x32xf32>
    %181 = vector.shape_cast %180 : vector<1x8x32xf32> to vector<8x32xf32>
    %182 = vector.shape_cast %179 : vector<8x32xf32> to vector<1x8x32xf32>
    tpu.vector_store %arg5[%c0_49, %c0_50, %c0_51], %182 {strides = array<i32>} : memref<1x8x32xf32, #tpu.memory_space<vmem>>, vector<1x8x32xf32>,
    return
  }
  func.func @transform_0(%arg0: i32) -> (i32, i32, i32) {
    %c0_i32 = arith.constant 0 : i32
    %c0_i32_0 = arith.constant 0 : i32
    %c0_i32_1 = arith.constant 0 : i32
    return %arg0, %c0_i32, %c0_i32_0 : i32, i32, i32
  }
  func.func @transform_1(%arg0: i32) -> (i32, i32) {
    %c0_i32 = arith.constant 0 : i32
    %c0_i32_0 = arith.constant 0 : i32
    %c0_i32_1 = arith.constant 0 : i32
    return %c0_i32, %c0_i32_0 : i32, i32
  }
  func.func @transform_2(%arg0: i32) -> (i32, i32) {
    %c0_i32 = arith.constant 0 : i32
    %c0_i32_0 = arith.constant 0 : i32
    %c0_i32_1 = arith.constant 0 : i32
    return %c0_i32, %c0_i32_0 : i32, i32
  }
  func.func @transform_3(%arg0: i32) -> (i32, i32) {
    %c0_i32 = arith.constant 0 : i32
    %c0_i32_0 = arith.constant 0 : i32
    %c0_i32_1 = arith.constant 0 : i32
    return %c0_i32, %c0_i32_0 : i32, i32
  }
  func.func @transform_4(%arg0: i32) -> (i32, i32, i32) {
    %c0_i32 = arith.constant 0 : i32
    %c0_i32_0 = arith.constant 0 : i32
    %c0_i32_1 = arith.constant 0 : i32
    return %arg0, %c0_i32, %c0_i32_0 : i32, i32, i32
  }
}

</mosaic_0001>

<llo_original>
// kernel: attention_forward.1
$region0: #{attention_forward.1}
  #allocation0 [shape = 'u32[]', space=smem, size = 0x4, offset = 0x4, fixed_abs, tag = 'smem constant byte address 0x4 - core index']
  #allocation1 [shape = 'u32[144,128]{1,0:T(1,128)}', space=vmem, size = 0x12000, scoped, tag = 'internal scratch']
  %s0 = inlined_call_operand.vmem [shape: f32[2,8,32], index: 0, kind: input, shape index: {}]
  %s1 = inlined_call_operand.vmem [shape: bf16[32,96], index: 1, kind: input, shape index: {}]
  %s2 = inlined_call_operand.vmem [shape: bf16[32,32], index: 2, kind: input, shape index: {}]
  %s3 = inlined_call_operand.vmem [shape: f32[1,32], index: 3, kind: input, shape index: {}]
  %s4 = inlined_call_operand.hbm [shape: f32[2,8,32], index: 4, kind: output, shape index: {}]
  %s5 = sld [smem:[#allocation0]]
  $region49: #{attention_forward.1} parent=0
    _
  %s7 = ssub.s32 1, %s5
  %s8 = scalar_select 0, %s7, %s5
  $region1: #{attention_forward.1} parent=0
    #allocation2 [shape = 'u8[8192]{0}', space=vmem, size = 0x2000, scoped, tag = 'output window, operand 0']
    #allocation3 [shape = 's32[2]{0}', space=sflag, size = 0x8, scoped, tag = 'scoped memory for attention_forward.1']
    %9 = vsyncpa [#allocation3], 0
    %s10 = scalar_lea.sflag [#allocation3], 1
    %11 = vsyncpa %s10, 0
    loop: start=0, step=1, limit=4
    $region2: #{attention_forward.1} parent=1 // loop_pre_header
      _
    $region3: #{attention_forward.1} parent=1 // loop_header
      %s13 = sphi 0, %s17
      %p14 = scmp.ge.s32.totalorder %s13, 4
      %s23 = sphi 0, %s25
      %s26 = sphi 0, %s23
      %s27 = sphi 0, %s26
      %s43 = sphi 0, %s27
      %s47 = sphi 0, %s47
      %s49 = sphi 0, %s47
      %s50 = sphi 0, %s49
      %s64 = sphi 0, %s50
      %s68 = sphi 0, %s68
      %s70 = sphi 0, %s68
      %s71 = sphi 0, %s70
      %s85 = sphi 0, %s71
      %s89 = sphi 0, %s89
      %s91 = sphi 0, %s89
      %s92 = sphi 0, %s91
      %s106 = sphi 0, %s92
      %s112 = sphi 0, %s114
      %s115 = sphi 0, %s112
      %s116 = sphi 0, %s115
      %s132 = sphi 0, %s116
    $region4: #{attention_forward.1} parent=1 // loop_header_branch
      %16 = sbr.rel (%p14) target = $region8
    $region5: #{attention_forward.1} parent=1 // loop_body
      %s18 = ssub.s32 %s13, 1
      %s19 = ssub.s32 %s13, 2
      %s20 = sadd.s32 %s13, 1
      %s21 = ssub.s32 %s13, %s20
      %p22 = scmp.eq.s32.totalorder %s21, 0
      %s24 = sadd.s32 %s23, 1
      %s25 = scalar_select %p22, %s23, %s24
      %p28 = pneg %p22
      %p29 = scmp.eq.s32.totalorder %s13, 1
      %p30 = por %p28, %p29
      %p31 = scmp.ne.s32.totalorder %s23, %s26
      %p32 = scmp.eq.s32.totalorder %s13, 0
      %p33 = por %p31, %p32
      %p34 = scmp.ne.s32.totalorder %s23, %s26
      %p35 = scmp.eq.s32.totalorder %s18, 1
      %p36 = por %p34, %p35
      %p37 = scmp.ne.s32.totalorder %s26, %s27
      %p38 = scmp.eq.s32.totalorder %s18, 0
      %p39 = por %p37, %p38
      %p40 = scmp.ne.s32.totalorder %s26, %s27
      %p41 = scmp.eq.s32.totalorder %s19, 1
      %p42 = por %p40, %p41
      %p44 = scmp.ne.s32.totalorder %s27, %s43
      %p45 = scmp.eq.s32.totalorder %s19, 0
      %p46 = por %p44, %p45
      %s48 = sadd.s32 %s47, 1
      %p51 = scmp.eq.s32.totalorder %s13, 1
      %p52 = scmp.ne.s32.totalorder %s47, %s49
      %p53 = scmp.eq.s32.totalorder %s13, 0
      %p54 = por %p52, %p53
      %p55 = scmp.ne.s32.totalorder %s47, %s49
      %p56 = scmp.eq.s32.totalorder %s18, 1
      %p57 = por %p55, %p56
      %p58 = scmp.ne.s32.totalorder %s49, %s50
      %p59 = scmp.eq.s32.totalorder %s18, 0
      %p60 = por %p58, %p59
      %p61 = scmp.ne.s32.totalorder %s49, %s50
      %p62 = scmp.eq.s32.totalorder %s19, 1
      %p63 = por %p61, %p62
      %p65 = scmp.ne.s32.totalorder %s50, %s64
      %p66 = scmp.eq.s32.totalorder %s19, 0
      %p67 = por %p65, %p66
      %s69 = sadd.s32 %s68, 1
      %p72 = scmp.eq.s32.totalorder %s13, 1
      %p73 = scmp.ne.s32.totalorder %s68, %s70
      %p74 = scmp.eq.s32.totalorder %s13, 0
      %p75 = por %p73, %p74
      %p76 = scmp.ne.s32.totalorder %s68, %s70
      %p77 = scmp.eq.s32.totalorder %s18, 1
      %p78 = por %p76, %p77
      %p79 = scmp.ne.s32.totalorder %s70, %s71
      %p80 = scmp.eq.s32.totalorder %s18, 0
      %p81 = por %p79, %p80
      %p82 = scmp.ne.s32.totalorder %s70, %s71
      %p83 = scmp.eq.s32.totalorder %s19, 1
      %p84 = por %p82, %p83
      %p86 = scmp.ne.s32.totalorder %s71, %s85
      %p87 = scmp.eq.s32.totalorder %s19, 0
      %p88 = por %p86, %p87
      %s90 = sadd.s32 %s89, 1
      %p93 = scmp.eq.s32.totalorder %s13, 1
      %p94 = scmp.ne.s32.totalorder %s89, %s91
      %p95 = scmp.eq.s32.totalorder %s13, 0
      %p96 = por %p94, %p95
      %p97 = scmp.ne.s32.totalorder %s89, %s91
      %p98 = scmp.eq.s32.totalorder %s18, 1
      %p99 = por %p97, %p98
      %p100 = scmp.ne.s32.totalorder %s91, %s92
      %p101 = scmp.eq.s32.totalorder %s18, 0
      %p102 = por %p100, %p101
      %p103 = scmp.ne.s32.totalorder %s91, %s92
      %p104 = scmp.eq.s32.totalorder %s19, 1
      %p105 = por %p103, %p104
      %p107 = scmp.ne.s32.totalorder %s92, %s106
      %p108 = scmp.eq.s32.totalorder %s19, 0
      %p109 = por %p107, %p108
      %s110 = ssub.s32 %s13, %s20
      %p111 = scmp.eq.s32.totalorder %s110, 0
      %s113 = sadd.s32 %s112, 1
      %s114 = scalar_select %p111, %s112, %s113
      %p117 = pneg %p111
      %p118 = scmp.eq.s32.totalorder %s13, 1
      %p119 = por %p117, %p118
      %p120 = scmp.ne.s32.totalorder %s112, %s115
      %p121 = scmp.eq.s32.totalorder %s13, 0
      %p122 = por %p120, %p121
      %p123 = scmp.ne.s32.totalorder %s112, %s115
      %p124 = scmp.eq.s32.totalorder %s18, 1
      %p125 = por %p123, %p124
      %p126 = scmp.ne.s32.totalorder %s115, %s116
      %p127 = scmp.eq.s32.totalorder %s18, 0
      %p128 = por %p126, %p127
      %p129 = scmp.ne.s32.totalorder %s115, %s116
      %p130 = scmp.eq.s32.totalorder %s19, 1
      %p131 = por %p129, %p130
      %p133 = scmp.ne.s32.totalorder %s116, %s132
      %p134 = scmp.eq.s32.totalorder %s19, 0
      %p135 = por %p133, %p134
      %p136 = scmp.le.s32.totalorder 1, %s13
      %p137 = scmp.lt.s32.totalorder %s13, 3
      %p138 = pnand %p136, %p137
      %p139 = pneg %p138
      // Predicated region
      $region9: #{attention_forward.1} parent=5 // pred_check
        _
      $region10: #{attention_forward.1} parent=5 // pred_check_branch
        %141 = sbr.rel (%p138) target = $region12
      $region11: #{attention_forward.1} parent=5 // pred_region
        %s142 = ssub.s32 %s13, 1
        // Predicated region
        $region13: #{attention_forward.1} parent=11 // pred_check
          %p143 = pneg %p60
        $region14: #{attention_forward.1} parent=11 // pred_check_branch
          %145 = sbr.rel (%p143) target = $region16
        $region15: #{attention_forward.1} parent=11 // pred_region
          _
        $region16: #{attention_forward.1} parent=11 // pred_fallthru
          _
        // Predicated region
        $region17: #{attention_forward.1} parent=11 // pred_check
          %p146 = pneg %p81
        $region18: #{attention_forward.1} parent=11 // pred_check_branch
          %148 = sbr.rel (%p146) target = $region20
        $region19: #{attention_forward.1} parent=11 // pred_region
          _
        $region20: #{attention_forward.1} parent=11 // pred_fallthru
          _
        // Predicated region
        $region21: #{attention_forward.1} parent=11 // pred_check
          %p149 = pneg %p102
        $region22: #{attention_forward.1} parent=11 // pred_check_branch
          %151 = sbr.rel (%p149) target = $region24
        $region23: #{attention_forward.1} parent=11 // pred_region
          _
        $region24: #{attention_forward.1} parent=11 // pred_fallthru
          _
      $region12: #{attention_forward.1} parent=5 // pred_fallthru
        _
      %p152 = scmp.lt.s32.totalorder %s13, 2
      // Predicated region
      $region25: #{attention_forward.1} parent=5 // pred_check
        %p153 = pneg %p152
      $region26: #{attention_forward.1} parent=5 // pred_check_branch
        %155 = sbr.rel (%p153) target = $region28
      $region27: #{attention_forward.1} parent=5 // pred_region
        // Predicated region
        $region29: #{attention_forward.1} parent=27 // pred_check
          %p156 = pneg %p33
        $region30: #{attention_forward.1} parent=27 // pred_check_branch
          %158 = sbr.rel (%p156) target = $region32
        $region31: #{attention_forward.1} parent=27 // pred_region
          %p159 = scmp.lt.s32.totalorder %s13, 1
          %s160 = scalar_select %p159, %s13, 1
          %s161 = smul.addr %s160, 8
          %s162 = scalar_lea.vmem %s0, %s161
        $region32: #{attention_forward.1} parent=27 // pred_fallthru
          _
      $region28: #{attention_forward.1} parent=5 // pred_fallthru
        _
      %p163 = scmp.le.s32.totalorder 1, %s13
      %p164 = scmp.lt.s32.totalorder %s13, 3
      %p165 = pnand %p163, %p164
      %p166 = pneg %p165
      // Predicated region
      $region33: #{attention_forward.1} parent=5 // pred_check
        _
      $region34: #{attention_forward.1} parent=5 // pred_check_branch
        %168 = sbr.rel (%p165) target = $region36
      $region35: #{attention_forward.1} parent=5 // pred_region
        %s169 = ssub.s32 %s13, 1
        %p170 = scmp.lt.s32.totalorder %s18, 1
        %s171 = scalar_select %p170, %s18, 1
        %s172 = smul.addr %s171, 8
        %s173 = scalar_lea.vmem %s0, %s172
        %p174 = pneg %p39
        %p175 = pneg %p36
        %p176 = pneg %p60
        %p177 = pneg %p57
        %p178 = pneg %p81
        %p179 = pneg %p78
        %p180 = pneg %p102
        %p181 = pneg %p99
        %p182 = pneg %p128
        %p183 = pneg %p125
        %s184 = sand.u32 %s115, 1
        %s185 = scalar_lea.sflag [#allocation3], %s184
        %s186 = sand.u32 %s115, 1
        %s187 = smul.addr %s186, 8
        %s188 = scalar_lea.vmem [#allocation2], %s187
        %p189 = scmp.lt.s32.totalorder %s18, 1
        %s190 = scalar_select %p189, %s18, 1
        %s191 = smul.addr %s190, 8
        %s192 = scalar_lea.vmem %s0, %s191
        %v194 = vld [vmem:[%s192] sm:$0xff]
        %v195 = vpack.c.bf16 %v194, %v194
        %v196 = vld [vmem:[%s1] sm:$0xf]
        %v197 = vld [vmem:[%s1 + $0x4] sm:$0xf]
        %v198 = vld [vmem:[%s1 + $0x8] sm:$0xf]
        %v199 = vld [vmem:[%s1 + $0xc] sm:$0xf]
        %v204 = vunpack.c.l.b16 %v196
        %v205 = vunpack.c.l.b16 %v197
        %v206 = vunpack.c.l.b16 %v198
        %v207 = vunpack.c.l.b16 %v199
        %v208 = vpack.c.b16 %v205, %v204
        %v209 = vpack.c.b16 %v207, %v206
        %vm212 = vcmask 261120
        %v214 = vsel %vm212, %v195, 0
        %216 = vmatprep.subr.bf16.mxu0 0
        %217 = vmatpush1.bf16.msra.mxu0 %v208
        %218 = vmatprep.subr.bf16.mxu0 0
        %219 = vmatpush1.bf16.msra.mxu0 %v209
        %220 = vmatprep.subr.bf16.mxu0 0
        %221 = vmatpush1.bf16.msra.mxu0 0
        %222 = vmatprep.subr.bf16.mxu0 0
        %223 = vmatpush1.bf16.msra.mxu0 0
        %224 = vmatprep.subr.bf16.mxu0 0
        %225 = vmatpush1.bf16.msra.mxu0 0
        %226 = vmatprep.subr.bf16.mxu0 0
        %227 = vmatpush1.bf16.msra.mxu0 0
        %228 = vmatprep.subr.bf16.mxu0 0
        %229 = vmatpush1.bf16.msra.mxu0 0
        %230 = vmatprep.subr.bf16.mxu0 0
        %231 = vmatpush1.bf16.msra.mxu0 0
        %232 = vmatprep.subr.bf16.mxu0 0
        %233 = vmatpush1.bf16.msra.mxu0 0
        %234 = vmatprep.subr.bf16.mxu0 0
        %235 = vmatpush1.bf16.msra.mxu0 0
        %236 = vmatprep.subr.bf16.mxu0 0
        %237 = vmatpush1.bf16.msra.mxu0 0
        %238 = vmatprep.subr.bf16.mxu0 0
        %239 = vmatpush1.bf16.msra.mxu0 0
        %240 = vmatprep.subr.bf16.mxu0 0
        %241 = vmatpush1.bf16.msra.mxu0 0
        %242 = vmatprep.subr.bf16.mxu0 0
        %243 = vmatpush1.bf16.msra.mxu0 0
        %244 = vmatprep.subr.bf16.mxu0 0
        %245 = vmatpush1.bf16.msra.mxu0 0
        %246 = vmatprep.subr.bf16.mxu0 0
        %247 = vmatpush1.bf16.msra.mxu0 0
        %248 = vmatprep.mubr.bf16.mxu0 0
        %249 = vmatmul.mubr.bf16.gmra.mrb[0].mxu0 %v214
        %v250 = vpop.f32.mrb[0].mxu0
        %v251 = vadd.f32 0.0, %v250
        %v252 = vpop.f32.mrb[0].mxu0
        %v253 = vpop.f32.mrb[0].mxu0
        %v254 = vpop.f32.mrb[0].mxu0
        %255 = vdwg.mxu0
        %v256 = vmul.f32 %v251, 0.5
        %v257 = vpack.c.bf16 %v256, %v256
        %v258 = vpack.c.bf16 %v251, %v251
        %260 = vrot.lane.b32.xlu0 %v258, 96
        %v261 = vpop.permute.xlu0 %260
        %vm262 = vcmask 31744
        %v264 = vsel %vm262, %v257, 0
        %v267 = vsel %vm262, %v261, 0
        %269 = vmatprep.subr.bf16.mxu0 0
        %270 = vmatpush1.bf16.xpose.msra.mxu0 %v267
        %271 = vmatprep.subr.bf16.mxu0 0
        %272 = vmatpush1.bf16.xpose.msra.mxu0 0
        %273 = vmatprep.subr.bf16.mxu0 0
        %274 = vmatpush1.bf16.xpose.msra.mxu0 0
        %275 = vmatprep.subr.bf16.mxu0 0
        %276 = vmatpush1.bf16.xpose.msra.mxu0 0
        %277 = vmatprep.subr.bf16.mxu0 0
        %278 = vmatpush1.bf16.xpose.msra.mxu0 0
        %279 = vmatprep.subr.bf16.mxu0 0
        %280 = vmatpush1.bf16.xpose.msra.mxu0 0
        %281 = vmatprep.subr.bf16.mxu0 0
        %282 = vmatpush1.bf16.xpose.msra.mxu0 0
        %283 = vmatprep.subr.bf16.mxu0 0
        %284 = vmatpush1.bf16.xpose.msra.mxu0 0
        %285 = vmatprep.subr.bf16.mxu0 0
        %286 = vmatpush1.bf16.xpose.msra.mxu0 0
        %287 = vmatprep.subr.bf16.mxu0 0
        %288 = vmatpush1.bf16.xpose.msra.mxu0 0
        %289 = vmatprep.subr.bf16.mxu0 0
        %290 = vmatpush1.bf16.xpose.msra.mxu0 0
        %291 = vmatprep.subr.bf16.mxu0 0
        %292 = vmatpush1.bf16.xpose.msra.mxu0 0
        %293 = vmatprep.subr.bf16.mxu0 0
        %294 = vmatpush1.bf16.xpose.msra.mxu0 0
        %295 = vmatprep.subr.bf16.mxu0 0
        %296 = vmatpush1.bf16.xpose.msra.mxu0 0
        %297 = vmatprep.subr.bf16.mxu0 0
        %298 = vmatpush1.bf16.xpose.msra.mxu0 0
        %299 = vmatprep.subr.bf16.mxu0 0
        %300 = vmatpush1.bf16.xpose.msra.mxu0 0
        %301 = vmatprep.mubr.bf16.mxu0 0
        %302 = vmatmul.mubr.bf16.gmra.mrb[0].mxu0 %v264
        %v303 = vpop.f32.mrb[0].mxu0
        %v304 = vadd.f32 0.0, %v303
        %v305 = vpop.f32.mrb[0].mxu0
        %v306 = vpop.f32.mrb[0].mxu0
        %v307 = vpop.f32.mrb[0].mxu0
        %308 = vdwg.mxu0
        %vm309 = vcmask 64512
        %v310 = vsel %vm309, %v304, -inf
        %311 = vmax.xlane.f32.xlu0 %v310
        %v312 = vpop.xlane.xlu0 %311
        %v313 = vsub.f32 %v304, %v312
        %v314 = vmul.f32 %v313, 1.442695
        %v315 = vpow.pop %v314
        %v316 = vsel %vm309, %v315, 0.0
        %317 = vadd.xlane.f32.xlu0 %v316
        %v318 = vpop.xlane.xlu0 %317
        %v319 = vpack.c.bf16 %v315, %v315
        %320 = vrot.lane.b32.xlu0 %v258, 64
        %v321 = vpop.permute.xlu0 %320
        %v323 = vsel %vm309, %v319, 0
        %vm325 = vcmask 1043456
        %v327 = vsel %vm325, %v321, 0
        %329 = vmatprep.subr.bf16.mxu0 0
        %330 = vmatpush1.bf16.msra.mxu0 %v327
        %331 = vmatprep.subr.bf16.mxu0 0
        %332 = vmatpush1.bf16.msra.mxu0 0
        %333 = vmatprep.subr.bf16.mxu0 0
        %334 = vmatpush1.bf16.msra.mxu0 0
        %335 = vmatprep.subr.bf16.mxu0 0
        %336 = vmatpush1.bf16.msra.mxu0 0
        %337 = vmatprep.subr.bf16.mxu0 0
        %338 = vmatpush1.bf16.msra.mxu0 0
        %339 = vmatprep.subr.bf16.mxu0 0
        %340 = vmatpush1.bf16.msra.mxu0 0
        %341 = vmatprep.subr.bf16.mxu0 0
        %342 = vmatpush1.bf16.msra.mxu0 0
        %343 = vmatprep.subr.bf16.mxu0 0
        %344 = vmatpush1.bf16.msra.mxu0 0
        %345 = vmatprep.subr.bf16.mxu0 0
        %346 = vmatpush1.bf16.msra.mxu0 0
        %347 = vmatprep.subr.bf16.mxu0 0
        %348 = vmatpush1.bf16.msra.mxu0 0
        %349 = vmatprep.subr.bf16.mxu0 0
        %350 = vmatpush1.bf16.msra.mxu0 0
        %351 = vmatprep.subr.bf16.mxu0 0
        %352 = vmatpush1.bf16.msra.mxu0 0
        %353 = vmatprep.subr.bf16.mxu0 0
        %354 = vmatpush1.bf16.msra.mxu0 0
        %355 = vmatprep.subr.bf16.mxu0 0
        %356 = vmatpush1.bf16.msra.mxu0 0
        %357 = vmatprep.subr.bf16.mxu0 0
        %358 = vmatpush1.bf16.msra.mxu0 0
        %359 = vmatprep.subr.bf16.mxu0 0
        %360 = vmatpush1.bf16.msra.mxu0 0
        %361 = vmatprep.mubr.bf16.mxu0 0
        %362 = vmatmul.mubr.bf16.gmra.mrb[0].mxu0 %v323
        %v363 = vpop.f32.mrb[0].mxu0
        %v364 = vadd.f32 0.0, %v363
        %v365 = vpop.f32.mrb[0].mxu0
        %v366 = vpop.f32.mrb[0].mxu0
        %v367 = vpop.f32.mrb[0].mxu0
        %368 = vdwg.mxu0
        %v369 = vrcp.pop %v318
        %v370 = vmul.f32 %v364, %v369
        %372 = vrot.lane.b32.xlu0 %v257, 124
        %v373 = vpop.permute.xlu0 %372
        %374 = vrot.lane.b32.xlu0 %v258, 92
        %v375 = vpop.permute.xlu0 %374
        %v377 = vsel %vm262, %v373, 0
        %v380 = vsel %vm262, %v375, 0
        %382 = vmatprep.subr.bf16.mxu0 0
        %383 = vmatpush1.bf16.xpose.msra.mxu0 %v380
        %384 = vmatprep.subr.bf16.mxu0 0
        %385 = vmatpush1.bf16.xpose.msra.mxu0 0
        %386 = vmatprep.subr.bf16.mxu0 0
        %387 = vmatpush1.bf16.xpose.msra.mxu0 0
        %388 = vmatprep.subr.bf16.mxu0 0
        %389 = vmatpush1.bf16.xpose.msra.mxu0 0
        %390 = vmatprep.subr.bf16.mxu0 0
        %391 = vmatpush1.bf16.xpose.msra.mxu0 0
        %392 = vmatprep.subr.bf16.mxu0 0
        %393 = vmatpush1.bf16.xpose.msra.mxu0 0
        %394 = vmatprep.subr.bf16.mxu0 0
        %395 = vmatpush1.bf16.xpose.msra.mxu0 0
        %396 = vmatprep.subr.bf16.mxu0 0
        %397 = vmatpush1.bf16.xpose.msra.mxu0 0
        %398 = vmatprep.subr.bf16.mxu0 0
        %399 = vmatpush1.bf16.xpose.msra.mxu0 0
        %400 = vmatprep.subr.bf16.mxu0 0
        %401 = vmatpush1.bf16.xpose.msra.mxu0 0
        %402 = vmatprep.subr.bf16.mxu0 0
        %403 = vmatpush1.bf16.xpose.msra.mxu0 0
        %404 = vmatprep.subr.bf16.mxu0 0
        %405 = vmatpush1.bf16.xpose.msra.mxu0 0
        %406 = vmatprep.subr.bf16.mxu0 0
        %407 = vmatpush1.bf16.xpose.msra.mxu0 0
        %408 = vmatprep.subr.bf16.mxu0 0
        %409 = vmatpush1.bf16.xpose.msra.mxu0 0
        %410 = vmatprep.subr.bf16.mxu0 0
        %411 = vmatpush1.bf16.xpose.msra.mxu0 0
        %412 = vmatprep.subr.bf16.mxu0 0
        %413 = vmatpush1.bf16.xpose.msra.mxu0 0
        %414 = vmatprep.mubr.bf16.mxu0 0
        %415 = vmatmul.mubr.bf16.gmra.mrb[0].mxu0 %v377
        %v416 = vpop.f32.mrb[0].mxu0
        %v417 = vadd.f32 0.0, %v416
        %v418 = vpop.f32.mrb[0].mxu0
        %v419 = vpop.f32.mrb[0].mxu0
        %v420 = vpop.f32.mrb[0].mxu0
        %421 = vdwg.mxu0
        %v422 = vsel %vm309, %v417, -inf
        %423 = vmax.xlane.f32.xlu0 %v422
        %v424 = vpop.xlane.xlu0 %423
        %v425 = vsub.f32 %v417, %v424
        %v426 = vmul.f32 %v425, 1.442695
        %v427 = vpow.pop %v426
        %v428 = vsel %vm309, %v427, 0.0
        %429 = vadd.xlane.f32.xlu0 %v428
        %v430 = vpop.xlane.xlu0 %429
        %v431 = vpack.c.bf16 %v427, %v427
        %432 = vrot.lane.b32.xlu0 %v258, 60
        %v433 = vpop.permute.xlu0 %432
        %v435 = vsel %vm309, %v431, 0
        %v438 = vsel %vm325, %v433, 0
        %440 = vmatprep.subr.bf16.mxu0 0
        %441 = vmatpush1.bf16.msra.mxu0 %v438
        %442 = vmatprep.subr.bf16.mxu0 0
        %443 = vmatpush1.bf16.msra.mxu0 0
        %444 = vmatprep.subr.bf16.mxu0 0
        %445 = vmatpush1.bf16.msra.mxu0 0
        %446 = vmatprep.subr.bf16.mxu0 0
        %447 = vmatpush1.bf16.msra.mxu0 0
        %448 = vmatprep.subr.bf16.mxu0 0
        %449 = vmatpush1.bf16.msra.mxu0 0
        %450 = vmatprep.subr.bf16.mxu0 0
        %451 = vmatpush1.bf16.msra.mxu0 0
        %452 = vmatprep.subr.bf16.mxu0 0
        %453 = vmatpush1.bf16.msra.mxu0 0
        %454 = vmatprep.subr.bf16.mxu0 0
        %455 = vmatpush1.bf16.msra.mxu0 0
        %456 = vmatprep.subr.bf16.mxu0 0
        %457 = vmatpush1.bf16.msra.mxu0 0
        %458 = vmatprep.subr.bf16.mxu0 0
        %459 = vmatpush1.bf16.msra.mxu0 0
        %460 = vmatprep.subr.bf16.mxu0 0
        %461 = vmatpush1.bf16.msra.mxu0 0
        %462 = vmatprep.subr.bf16.mxu0 0
        %463 = vmatpush1.bf16.msra.mxu0 0
        %464 = vmatprep.subr.bf16.mxu0 0
        %465 = vmatpush1.bf16.msra.mxu0 0
        %466 = vmatprep.subr.bf16.mxu0 0
        %467 = vmatpush1.bf16.msra.mxu0 0
        %468 = vmatprep.subr.bf16.mxu0 0
        %469 = vmatpush1.bf16.msra.mxu0 0
        %470 = vmatprep.subr.bf16.mxu0 0
        %471 = vmatpush1.bf16.msra.mxu0 0
        %472 = vmatprep.mubr.bf16.mxu0 0
        %473 = vmatmul.mubr.bf16.gmra.mrb[0].mxu0 %v435
        %v474 = vpop.f32.mrb[0].mxu0
        %v475 = vadd.f32 0.0, %v474
        %v476 = vpop.f32.mrb[0].mxu0
        %v477 = vpop.f32.mrb[0].mxu0
        %v478 = vpop.f32.mrb[0].mxu0
        %479 = vdwg.mxu0
        %v480 = vrcp.pop %v430
        %v481 = vmul.f32 %v475, %v480
        %482 = vrot.lane.b32.xlu0 %v257, 120
        %v483 = vpop.permute.xlu0 %482
        %484 = vrot.lane.b32.xlu0 %v258, 88
        %v485 = vpop.permute.xlu0 %484
        %v487 = vsel %vm262, %v483, 0
        %v490 = vsel %vm262, %v485, 0
        %492 = vmatprep.subr.bf16.mxu0 0
        %493 = vmatpush1.bf16.xpose.msra.mxu0 %v490
        %494 = vmatprep.subr.bf16.mxu0 0
        %495 = vmatpush1.bf16.xpose.msra.mxu0 0
        %496 = vmatprep.subr.bf16.mxu0 0
        %497 = vmatpush1.bf16.xpose.msra.mxu0 0
        %498 = vmatprep.subr.bf16.mxu0 0
        %499 = vmatpush1.bf16.xpose.msra.mxu0 0
        %500 = vmatprep.subr.bf16.mxu0 0
        %501 = vmatpush1.bf16.xpose.msra.mxu0 0
        %502 = vmatprep.subr.bf16.mxu0 0
        %503 = vmatpush1.bf16.xpose.msra.mxu0 0
        %504 = vmatprep.subr.bf16.mxu0 0
        %505 = vmatpush1.bf16.xpose.msra.mxu0 0
        %506 = vmatprep.subr.bf16.mxu0 0
        %507 = vmatpush1.bf16.xpose.msra.mxu0 0
        %508 = vmatprep.subr.bf16.mxu0 0
        %509 = vmatpush1.bf16.xpose.msra.mxu0 0
        %510 = vmatprep.subr.bf16.mxu0 0
        %511 = vmatpush1.bf16.xpose.msra.mxu0 0
        %512 = vmatprep.subr.bf16.mxu0 0
        %513 = vmatpush1.bf16.xpose.msra.mxu0 0
        %514 = vmatprep.subr.bf16.mxu0 0
        %515 = vmatpush1.bf16.xpose.msra.mxu0 0
        %516 = vmatprep.subr.bf16.mxu0 0
        %517 = vmatpush1.bf16.xpose.msra.mxu0 0
        %518 = vmatprep.subr.bf16.mxu0 0
        %519 = vmatpush1.bf16.xpose.msra.mxu0 0
        %520 = vmatprep.subr.bf16.mxu0 0
        %521 = vmatpush1.bf16.xpose.msra.mxu0 0
        %522 = vmatprep.subr.bf16.mxu0 0
        %523 = vmatpush1.bf16.xpose.msra.mxu0 0
        %524 = vmatprep.mubr.bf16.mxu0 0
        %525 = vmatmul.mubr.bf16.gmra.mrb[0].mxu0 %v487
        %v526 = vpop.f32.mrb[0].mxu0
        %v527 = vadd.f32 0.0, %v526
        %v528 = vpop.f32.mrb[0].mxu0
        %v529 = vpop.f32.mrb[0].mxu0
        %v530 = vpop.f32.mrb[0].mxu0
        %531 = vdwg.mxu0
        %v532 = vsel %vm309, %v527, -inf
        %533 = vmax.xlane.f32.xlu0 %v532
        %v534 = vpop.xlane.xlu0 %533
        %v535 = vsub.f32 %v527, %v534
        %v536 = vmul.f32 %v535, 1.442695
        %v537 = vpow.pop %v536
        %v538 = vsel %vm309, %v537, 0.0
        %539 = vadd.xlane.f32.xlu0 %v538
        %v540 = vpop.xlane.xlu0 %539
        %v541 = vpack.c.bf16 %v537, %v537
        %542 = vrot.lane.b32.xlu0 %v258, 56
        %v543 = vpop.permute.xlu0 %542
        %v545 = vsel %vm309, %v541, 0
        %v548 = vsel %vm325, %v543, 0
        %550 = vmatprep.subr.bf16.mxu0 0
        %551 = vmatpush1.bf16.msra.mxu0 %v548
        %552 = vmatprep.subr.bf16.mxu0 0
        %553 = vmatpush1.bf16.msra.mxu0 0
        %554 = vmatprep.subr.bf16.mxu0 0
        %555 = vmatpush1.bf16.msra.mxu0 0
        %556 = vmatprep.subr.bf16.mxu0 0
        %557 = vmatpush1.bf16.msra.mxu0 0
        %558 = vmatprep.subr.bf16.mxu0 0
        %559 = vmatpush1.bf16.msra.mxu0 0
        %560 = vmatprep.subr.bf16.mxu0 0
        %561 = vmatpush1.bf16.msra.mxu0 0
        %562 = vmatprep.subr.bf16.mxu0 0
        %563 = vmatpush1.bf16.msra.mxu0 0
        %564 = vmatprep.subr.bf16.mxu0 0
        %565 = vmatpush1.bf16.msra.mxu0 0
        %566 = vmatprep.subr.bf16.mxu0 0
        %567 = vmatpush1.bf16.msra.mxu0 0
        %568 = vmatprep.subr.bf16.mxu0 0
        %569 = vmatpush1.bf16.msra.mxu0 0
        %570 = vmatprep.subr.bf16.mxu0 0
        %571 = vmatpush1.bf16.msra.mxu0 0
        %572 = vmatprep.subr.bf16.mxu0 0
        %573 = vmatpush1.bf16.msra.mxu0 0
        %574 = vmatprep.subr.bf16.mxu0 0
        %575 = vmatpush1.bf16.msra.mxu0 0
        %576 = vmatprep.subr.bf16.mxu0 0
        %577 = vmatpush1.bf16.msra.mxu0 0
        %578 = vmatprep.subr.bf16.mxu0 0
        %579 = vmatpush1.bf16.msra.mxu0 0
        %580 = vmatprep.subr.bf16.mxu0 0
        %581 = vmatpush1.bf16.msra.mxu0 0
        %582 = vmatprep.mubr.bf16.mxu0 0
        %583 = vmatmul.mubr.bf16.gmra.mrb[0].mxu0 %v545
        %v584 = vpop.f32.mrb[0].mxu0
        %v585 = vadd.f32 0.0, %v584
        %v586 = vpop.f32.mrb[0].mxu0
        %v587 = vpop.f32.mrb[0].mxu0
        %v588 = vpop.f32.mrb[0].mxu0
        %589 = vdwg.mxu0
        %v590 = vrcp.pop %v540
        %v591 = vmul.f32 %v585, %v590
        %592 = vrot.lane.b32.xlu0 %v257, 116
        %v593 = vpop.permute.xlu0 %592
        %594 = vrot.lane.b32.xlu0 %v258, 84
        %v595 = vpop.permute.xlu0 %594
        %v597 = vsel %vm262, %v593, 0
        %v600 = vsel %vm262, %v595, 0
        %602 = vmatprep.subr.bf16.mxu0 0
        %603 = vmatpush1.bf16.xpose.msra.mxu0 %v600
        %604 = vmatprep.subr.bf16.mxu0 0
        %605 = vmatpush1.bf16.xpose.msra.mxu0 0
        %606 = vmatprep.subr.bf16.mxu0 0
        %607 = vmatpush1.bf16.xpose.msra.mxu0 0
        %608 = vmatprep.subr.bf16.mxu0 0
        %609 = vmatpush1.bf16.xpose.msra.mxu0 0
        %610 = vmatprep.subr.bf16.mxu0 0
        %611 = vmatpush1.bf16.xpose.msra.mxu0 0
        %612 = vmatprep.subr.bf16.mxu0 0
        %613 = vmatpush1.bf16.xpose.msra.mxu0 0
        %614 = vmatprep.subr.bf16.mxu0 0
        %615 = vmatpush1.bf16.xpose.msra.mxu0 0
        %616 = vmatprep.subr.bf16.mxu0 0
        %617 = vmatpush1.bf16.xpose.msra.mxu0 0
        %618 = vmatprep.subr.bf16.mxu0 0
        %619 = vmatpush1.bf16.xpose.msra.mxu0 0
        %620 = vmatprep.subr.bf16.mxu0 0
        %621 = vmatpush1.bf16.xpose.msra.mxu0 0
        %622 = vmatprep.subr.bf16.mxu0 0
        %623 = vmatpush1.bf16.xpose.msra.mxu0 0
        %624 = vmatprep.subr.bf16.mxu0 0
        %625 = vmatpush1.bf16.xpose.msra.mxu0 0
        %626 = vmatprep.subr.bf16.mxu0 0
        %627 = vmatpush1.bf16.xpose.msra.mxu0 0
        %628 = vmatprep.subr.bf16.mxu0 0
        %629 = vmatpush1.bf16.xpose.msra.mxu0 0
        %630 = vmatprep.subr.bf16.mxu0 0
        %631 = vmatpush1.bf16.xpose.msra.mxu0 0
        %632 = vmatprep.subr.bf16.mxu0 0
        %633 = vmatpush1.bf16.xpose.msra.mxu0 0
        %634 = vmatprep.mubr.bf16.mxu0 0
        %635 = vmatmul.mubr.bf16.gmra.mrb[0].mxu0 %v597
        %v636 = vpop.f32.mrb[0].mxu0
        %v637 = vadd.f32 0.0, %v636
        %v638 = vpop.f32.mrb[0].mxu0
        %v639 = vpop.f32.mrb[0].mxu0
        %v640 = vpop.f32.mrb[0].mxu0
        %641 = vdwg.mxu0
        %v642 = vsel %vm309, %v637, -inf
        %643 = vmax.xlane.f32.xlu0 %v642
        %v644 = vpop.xlane.xlu0 %643
        %v645 = vsub.f32 %v637, %v644
        %v646 = vmul.f32 %v645, 1.442695
        %v647 = vpow.pop %v646
        %v648 = vsel %vm309, %v647, 0.0
        %649 = vadd.xlane.f32.xlu0 %v648
        %v650 = vpop.xlane.xlu0 %649
        %v651 = vpack.c.bf16 %v647, %v647
        %652 = vrot.lane.b32.xlu0 %v258, 52
        %v653 = vpop.permute.xlu0 %652
        %v655 = vsel %vm309, %v651, 0
        %v658 = vsel %vm325, %v653, 0
        %660 = vmatprep.subr.bf16.mxu0 0
        %661 = vmatpush1.bf16.msra.mxu0 %v658
        %662 = vmatprep.subr.bf16.mxu0 0
        %663 = vmatpush1.bf16.msra.mxu0 0
        %664 = vmatprep.subr.bf16.mxu0 0
        %665 = vmatpush1.bf16.msra.mxu0 0
        %666 = vmatprep.subr.bf16.mxu0 0
        %667 = vmatpush1.bf16.msra.mxu0 0
        %668 = vmatprep.subr.bf16.mxu0 0
        %669 = vmatpush1.bf16.msra.mxu0 0
        %670 = vmatprep.subr.bf16.mxu0 0
        %671 = vmatpush1.bf16.msra.mxu0 0
        %672 = vmatprep.subr.bf16.mxu0 0
        %673 = vmatpush1.bf16.msra.mxu0 0
        %674 = vmatprep.subr.bf16.mxu0 0
        %675 = vmatpush1.bf16.msra.mxu0 0
        %676 = vmatprep.subr.bf16.mxu0 0
        %677 = vmatpush1.bf16.msra.mxu0 0
        %678 = vmatprep.subr.bf16.mxu0 0
        %679 = vmatpush1.bf16.msra.mxu0 0
        %680 = vmatprep.subr.bf16.mxu0 0
        %681 = vmatpush1.bf16.msra.mxu0 0
        %682 = vmatprep.subr.bf16.mxu0 0
        %683 = vmatpush1.bf16.msra.mxu0 0
        %684 = vmatprep.subr.bf16.mxu0 0
        %685 = vmatpush1.bf16.msra.mxu0 0
        %686 = vmatprep.subr.bf16.mxu0 0
        %687 = vmatpush1.bf16.msra.mxu0 0
        %688 = vmatprep.subr.bf16.mxu0 0
        %689 = vmatpush1.bf16.msra.mxu0 0
        %690 = vmatprep.subr.bf16.mxu0 0
        %691 = vmatpush1.bf16.msra.mxu0 0
        %692 = vmatprep.mubr.bf16.mxu0 0
        %693 = vmatmul.mubr.bf16.gmra.mrb[0].mxu0 %v655
        %v694 = vpop.f32.mrb[0].mxu0
        %v695 = vadd.f32 0.0, %v694
        %v696 = vpop.f32.mrb[0].mxu0
        %v697 = vpop.f32.mrb[0].mxu0
        %v698 = vpop.f32.mrb[0].mxu0
        %699 = vdwg.mxu0
        %v700 = vrcp.pop %v650
        %v701 = vmul.f32 %v695, %v700
        %702 = vrot.lane.b32.xlu0 %v257, 112
        %v703 = vpop.permute.xlu0 %702
        %704 = vrot.lane.b32.xlu0 %v258, 80
        %v705 = vpop.permute.xlu0 %704
        %v707 = vsel %vm262, %v703, 0
        %v710 = vsel %vm262, %v705, 0
        %712 = vmatprep.subr.bf16.mxu0 0
        %713 = vmatpush1.bf16.xpose.msra.mxu0 %v710
        %714 = vmatprep.subr.bf16.mxu0 0
        %715 = vmatpush1.bf16.xpose.msra.mxu0 0
        %716 = vmatprep.subr.bf16.mxu0 0
        %717 = vmatpush1.bf16.xpose.msra.mxu0 0
        %718 = vmatprep.subr.bf16.mxu0 0
        %719 = vmatpush1.bf16.xpose.msra.mxu0 0
        %720 = vmatprep.subr.bf16.mxu0 0
        %721 = vmatpush1.bf16.xpose.msra.mxu0 0
        %722 = vmatprep.subr.bf16.mxu0 0
        %723 = vmatpush1.bf16.xpose.msra.mxu0 0
        %724 = vmatprep.subr.bf16.mxu0 0
        %725 = vmatpush1.bf16.xpose.msra.mxu0 0
        %726 = vmatprep.subr.bf16.mxu0 0
        %727 = vmatpush1.bf16.xpose.msra.mxu0 0
        %728 = vmatprep.subr.bf16.mxu0 0
        %729 = vmatpush1.bf16.xpose.msra.mxu0 0
        %730 = vmatprep.subr.bf16.mxu0 0
        %731 = vmatpush1.bf16.xpose.msra.mxu0 0
        %732 = vmatprep.subr.bf16.mxu0 0
        %733 = vmatpush1.bf16.xpose.msra.mxu0 0
        %734 = vmatprep.subr.bf16.mxu0 0
        %735 = vmatpush1.bf16.xpose.msra.mxu0 0
        %736 = vmatprep.subr.bf16.mxu0 0
        %737 = vmatpush1.bf16.xpose.msra.mxu0 0
        %738 = vmatprep.subr.bf16.mxu0 0
        %739 = vmatpush1.bf16.xpose.msra.mxu0 0
        %740 = vmatprep.subr.bf16.mxu0 0
        %741 = vmatpush1.bf16.xpose.msra.mxu0 0
        %742 = vmatprep.subr.bf16.mxu0 0
        %743 = vmatpush1.bf16.xpose.msra.mxu0 0
        %744 = vmatprep.mubr.bf16.mxu0 0
        %745 = vmatmul.mubr.bf16.gmra.mrb[0].mxu0 %v707
        %v746 = vpop.f32.mrb[0].mxu0
        %v747 = vadd.f32 0.0, %v746
        %v748 = vpop.f32.mrb[0].mxu0
        %v749 = vpop.f32.mrb[0].mxu0
        %v750 = vpop.f32.mrb[0].mxu0
        %751 = vdwg.mxu0
        %v752 = vsel %vm309, %v747, -inf
        %753 = vmax.xlane.f32.xlu0 %v752
        %v754 = vpop.xlane.xlu0 %753
        %v755 = vsub.f32 %v747, %v754
        %v756 = vmul.f32 %v755, 1.442695
        %v757 = vpow.pop %v756
        %v758 = vsel %vm309, %v757, 0.0
        %759 = vadd.xlane.f32.xlu0 %v758
        %v760 = vpop.xlane.xlu0 %759
        %v761 = vpack.c.bf16 %v757, %v757
        %762 = vrot.lane.b32.xlu0 %v258, 48
        %v763 = vpop.permute.xlu0 %762
        %v765 = vsel %vm309, %v761, 0
        %v768 = vsel %vm325, %v763, 0
        %770 = vmatprep.subr.bf16.mxu0 0
        %771 = vmatpush1.bf16.msra.mxu0 %v768
        %772 = vmatprep.subr.bf16.mxu0 0
        %773 = vmatpush1.bf16.msra.mxu0 0
        %774 = vmatprep.subr.bf16.mxu0 0
        %775 = vmatpush1.bf16.msra.mxu0 0
        %776 = vmatprep.subr.bf16.mxu0 0
        %777 = vmatpush1.bf16.msra.mxu0 0
        %778 = vmatprep.subr.bf16.mxu0 0
        %779 = vmatpush1.bf16.msra.mxu0 0
        %780 = vmatprep.subr.bf16.mxu0 0
        %781 = vmatpush1.bf16.msra.mxu0 0
        %782 = vmatprep.subr.bf16.mxu0 0
        %783 = vmatpush1.bf16.msra.mxu0 0
        %784 = vmatprep.subr.bf16.mxu0 0
        %785 = vmatpush1.bf16.msra.mxu0 0
        %786 = vmatprep.subr.bf16.mxu0 0
        %787 = vmatpush1.bf16.msra.mxu0 0
        %788 = vmatprep.subr.bf16.mxu0 0
        %789 = vmatpush1.bf16.msra.mxu0 0
        %790 = vmatprep.subr.bf16.mxu0 0
        %791 = vmatpush1.bf16.msra.mxu0 0
        %792 = vmatprep.subr.bf16.mxu0 0
        %793 = vmatpush1.bf16.msra.mxu0 0
        %794 = vmatprep.subr.bf16.mxu0 0
        %795 = vmatpush1.bf16.msra.mxu0 0
        %796 = vmatprep.subr.bf16.mxu0 0
        %797 = vmatpush1.bf16.msra.mxu0 0
        %798 = vmatprep.subr.bf16.mxu0 0
        %799 = vmatpush1.bf16.msra.mxu0 0
        %800 = vmatprep.subr.bf16.mxu0 0
        %801 = vmatpush1.bf16.msra.mxu0 0
        %802 = vmatprep.mubr.bf16.mxu0 0
        %803 = vmatmul.mubr.bf16.gmra.mrb[0].mxu0 %v765
        %v804 = vpop.f32.mrb[0].mxu0
        %v805 = vadd.f32 0.0, %v804
        %v806 = vpop.f32.mrb[0].mxu0
        %v807 = vpop.f32.mrb[0].mxu0
        %v808 = vpop.f32.mrb[0].mxu0
        %809 = vdwg.mxu0
        %v810 = vrcp.pop %v760
        %v811 = vmul.f32 %v805, %v810
        %812 = vrot.lane.b32.xlu0 %v257, 108
        %v813 = vpop.permute.xlu0 %812
        %814 = vrot.lane.b32.xlu0 %v258, 76
        %v815 = vpop.permute.xlu0 %814
        %v817 = vsel %vm262, %v813, 0
        %v820 = vsel %vm262, %v815, 0
        %822 = vmatprep.subr.bf16.mxu0 0
        %823 = vmatpush1.bf16.xpose.msra.mxu0 %v820
        %824 = vmatprep.subr.bf16.mxu0 0
        %825 = vmatpush1.bf16.xpose.msra.mxu0 0
        %826 = vmatprep.subr.bf16.mxu0 0
        %827 = vmatpush1.bf16.xpose.msra.mxu0 0
        %828 = vmatprep.subr.bf16.mxu0 0
        %829 = vmatpush1.bf16.xpose.msra.mxu0 0
        %830 = vmatprep.subr.bf16.mxu0 0
        %831 = vmatpush1.bf16.xpose.msra.mxu0 0
        %832 = vmatprep.subr.bf16.mxu0 0
        %833 = vmatpush1.bf16.xpose.msra.mxu0 0
        %834 = vmatprep.subr.bf16.mxu0 0
        %835 = vmatpush1.bf16.xpose.msra.mxu0 0
        %836 = vmatprep.subr.bf16.mxu0 0
        %837 = vmatpush1.bf16.xpose.msra.mxu0 0
        %838 = vmatprep.subr.bf16.mxu0 0
        %839 = vmatpush1.bf16.xpose.msra.mxu0 0
        %840 = vmatprep.subr.bf16.mxu0 0
        %841 = vmatpush1.bf16.xpose.msra.mxu0 0
        %842 = vmatprep.subr.bf16.mxu0 0
        %843 = vmatpush1.bf16.xpose.msra.mxu0 0
        %844 = vmatprep.subr.bf16.mxu0 0
        %845 = vmatpush1.bf16.xpose.msra.mxu0 0
        %846 = vmatprep.subr.bf16.mxu0 0
        %847 = vmatpush1.bf16.xpose.msra.mxu0 0
        %848 = vmatprep.subr.bf16.mxu0 0
        %849 = vmatpush1.bf16.xpose.msra.mxu0 0
        %850 = vmatprep.subr.bf16.mxu0 0
        %851 = vmatpush1.bf16.xpose.msra.mxu0 0
        %852 = vmatprep.subr.bf16.mxu0 0
        %853 = vmatpush1.bf16.xpose.msra.mxu0 0
        %854 = vmatprep.mubr.bf16.mxu0 0
        %855 = vmatmul.mubr.bf16.gmra.mrb[0].mxu0 %v817
        %v856 = vpop.f32.mrb[0].mxu0
        %v857 = vadd.f32 0.0, %v856
        %v858 = vpop.f32.mrb[0].mxu0
        %v859 = vpop.f32.mrb[0].mxu0
        %v860 = vpop.f32.mrb[0].mxu0
        %861 = vdwg.mxu0
        %v862 = vsel %vm309, %v857, -inf
        %863 = vmax.xlane.f32.xlu0 %v862
        %v864 = vpop.xlane.xlu0 %863
        %v865 = vsub.f32 %v857, %v864
        %v866 = vmul.f32 %v865, 1.442695
        %v867 = vpow.pop %v866
        %v868 = vsel %vm309, %v867, 0.0
        %869 = vadd.xlane.f32.xlu0 %v868
        %v870 = vpop.xlane.xlu0 %869
        %v871 = vpack.c.bf16 %v867, %v867
        %872 = vrot.lane.b32.xlu0 %v258, 44
        %v873 = vpop.permute.xlu0 %872
        %v875 = vsel %vm309, %v871, 0
        %v878 = vsel %vm325, %v873, 0
        %880 = vmatprep.subr.bf16.mxu0 0
        %881 = vmatpush1.bf16.msra.mxu0 %v878
        %882 = vmatprep.subr.bf16.mxu0 0
        %883 = vmatpush1.bf16.msra.mxu0 0
        %884 = vmatprep.subr.bf16.mxu0 0
        %885 = vmatpush1.bf16.msra.mxu0 0
        %886 = vmatprep.subr.bf16.mxu0 0
        %887 = vmatpush1.bf16.msra.mxu0 0
        %888 = vmatprep.subr.bf16.mxu0 0
        %889 = vmatpush1.bf16.msra.mxu0 0
        %890 = vmatprep.subr.bf16.mxu0 0
        %891 = vmatpush1.bf16.msra.mxu0 0
        %892 = vmatprep.subr.bf16.mxu0 0
        %893 = vmatpush1.bf16.msra.mxu0 0
        %894 = vmatprep.subr.bf16.mxu0 0
        %895 = vmatpush1.bf16.msra.mxu0 0
        %896 = vmatprep.subr.bf16.mxu0 0
        %897 = vmatpush1.bf16.msra.mxu0 0
        %898 = vmatprep.subr.bf16.mxu0 0
        %899 = vmatpush1.bf16.msra.mxu0 0
        %900 = vmatprep.subr.bf16.mxu0 0
        %901 = vmatpush1.bf16.msra.mxu0 0
        %902 = vmatprep.subr.bf16.mxu0 0
        %903 = vmatpush1.bf16.msra.mxu0 0
        %904 = vmatprep.subr.bf16.mxu0 0
        %905 = vmatpush1.bf16.msra.mxu0 0
        %906 = vmatprep.subr.bf16.mxu0 0
        %907 = vmatpush1.bf16.msra.mxu0 0
        %908 = vmatprep.subr.bf16.mxu0 0
        %909 = vmatpush1.bf16.msra.mxu0 0
        %910 = vmatprep.subr.bf16.mxu0 0
        %911 = vmatpush1.bf16.msra.mxu0 0
        %912 = vmatprep.mubr.bf16.mxu0 0
        %913 = vmatmul.mubr.bf16.gmra.mrb[0].mxu0 %v875
        %v914 = vpop.f32.mrb[0].mxu0
        %v915 = vadd.f32 0.0, %v914
        %v916 = vpop.f32.mrb[0].mxu0
        %v917 = vpop.f32.mrb[0].mxu0
        %v918 = vpop.f32.mrb[0].mxu0
        %919 = vdwg.mxu0
        %v920 = vrcp.pop %v870
        %v921 = vmul.f32 %v915, %v920
        %922 = vrot.lane.b32.xlu0 %v257, 104
        %v923 = vpop.permute.xlu0 %922
        %924 = vrot.lane.b32.xlu0 %v258, 72
        %v925 = vpop.permute.xlu0 %924
        %v927 = vsel %vm262, %v923, 0
        %v930 = vsel %vm262, %v925, 0
        %932 = vmatprep.subr.bf16.mxu0 0
        %933 = vmatpush1.bf16.xpose.msra.mxu0 %v930
        %934 = vmatprep.subr.bf16.mxu0 0
        %935 = vmatpush1.bf16.xpose.msra.mxu0 0
        %936 = vmatprep.subr.bf16.mxu0 0
        %937 = vmatpush1.bf16.xpose.msra.mxu0 0
        %938 = vmatprep.subr.bf16.mxu0 0
        %939 = vmatpush1.bf16.xpose.msra.mxu0 0
        %940 = vmatprep.subr.bf16.mxu0 0
        %941 = vmatpush1.bf16.xpose.msra.mxu0 0
        %942 = vmatprep.subr.bf16.mxu0 0
        %943 = vmatpush1.bf16.xpose.msra.mxu0 0
        %944 = vmatprep.subr.bf16.mxu0 0
        %945 = vmatpush1.bf16.xpose.msra.mxu0 0
        %946 = vmatprep.subr.bf16.mxu0 0
        %947 = vmatpush1.bf16.xpose.msra.mxu0 0
        %948 = vmatprep.subr.bf16.mxu0 0
        %949 = vmatpush1.bf16.xpose.msra.mxu0 0
        %950 = vmatprep.subr.bf16.mxu0 0
        %951 = vmatpush1.bf16.xpose.msra.mxu0 0
        %952 = vmatprep.subr.bf16.mxu0 0
        %953 = vmatpush1.bf16.xpose.msra.mxu0 0
        %954 = vmatprep.subr.bf16.mxu0 0
        %955 = vmatpush1.bf16.xpose.msra.mxu0 0
        %956 = vmatprep.subr.bf16.mxu0 0
        %957 = vmatpush1.bf16.xpose.msra.mxu0 0
        %958 = vmatprep.subr.bf16.mxu0 0
        %959 = vmatpush1.bf16.xpose.msra.mxu0 0
        %960 = vmatprep.subr.bf16.mxu0 0
        %961 = vmatpush1.bf16.xpose.msra.mxu0 0
        %962 = vmatprep.subr.bf16.mxu0 0
        %963 = vmatpush1.bf16.xpose.msra.mxu0 0
        %964 = vmatprep.mubr.bf16.mxu0 0
        %965 = vmatmul.mubr.bf16.gmra.mrb[0].mxu0 %v927
        %v966 = vpop.f32.mrb[0].mxu0
        %v967 = vadd.f32 0.0, %v966
        %v968 = vpop.f32.mrb[0].mxu0
        %v969 = vpop.f32.mrb[0].mxu0
        %v970 = vpop.f32.mrb[0].mxu0
        %971 = vdwg.mxu0
        %v972 = vsel %vm309, %v967, -inf
        %973 = vmax.xlane.f32.xlu0 %v972
        %v974 = vpop.xlane.xlu0 %973
        %v975 = vsub.f32 %v967, %v974
        %v976 = vmul.f32 %v975, 1.442695
        %v977 = vpow.pop %v976
        %v978 = vsel %vm309, %v977, 0.0
        %979 = vadd.xlane.f32.xlu0 %v978
        %v980 = vpop.xlane.xlu0 %979
        %v981 = vpack.c.bf16 %v977, %v977
        %982 = vrot.lane.b32.xlu0 %v258, 40
        %v983 = vpop.permute.xlu0 %982
        %v985 = vsel %vm309, %v981, 0
        %v988 = vsel %vm325, %v983, 0
        %990 = vmatprep.subr.bf16.mxu0 0
        %991 = vmatpush1.bf16.msra.mxu0 %v988
        %992 = vmatprep.subr.bf16.mxu0 0
        %993 = vmatpush1.bf16.msra.mxu0 0
        %994 = vmatprep.subr.bf16.mxu0 0
        %995 = vmatpush1.bf16.msra.mxu0 0
        %996 = vmatprep.subr.bf16.mxu0 0
        %997 = vmatpush1.bf16.msra.mxu0 0
        %998 = vmatprep.subr.bf16.mxu0 0
        %999 = vmatpush1.bf16.msra.mxu0 0
        %1000 = vmatprep.subr.bf16.mxu0 0
        %1001 = vmatpush1.bf16.msra.mxu0 0
        %1002 = vmatprep.subr.bf16.mxu0 0
        %1003 = vmatpush1.bf16.msra.mxu0 0
        %1004 = vmatprep.subr.bf16.mxu0 0
        %1005 = vmatpush1.bf16.msra.mxu0 0
        %1006 = vmatprep.subr.bf16.mxu0 0
        %1007 = vmatpush1.bf16.msra.mxu0 0
        %1008 = vmatprep.subr.bf16.mxu0 0
        %1009 = vmatpush1.bf16.msra.mxu0 0
        %1010 = vmatprep.subr.bf16.mxu0 0
        %1011 = vmatpush1.bf16.msra.mxu0 0
        %1012 = vmatprep.subr.bf16.mxu0 0
        %1013 = vmatpush1.bf16.msra.mxu0 0
        %1014 = vmatprep.subr.bf16.mxu0 0
        %1015 = vmatpush1.bf16.msra.mxu0 0
        %1016 = vmatprep.subr.bf16.mxu0 0
        %1017 = vmatpush1.bf16.msra.mxu0 0
        %1018 = vmatprep.subr.bf16.mxu0 0
        %1019 = vmatpush1.bf16.msra.mxu0 0
        %1020 = vmatprep.subr.bf16.mxu0 0
        %1021 = vmatpush1.bf16.msra.mxu0 0
        %1022 = vmatprep.mubr.bf16.mxu0 0
        %1023 = vmatmul.mubr.bf16.gmra.mrb[0].mxu0 %v985
        %v1024 = vpop.f32.mrb[0].mxu0
        %v1025 = vadd.f32 0.0, %v1024
        %v1026 = vpop.f32.mrb[0].mxu0
        %v1027 = vpop.f32.mrb[0].mxu0
        %v1028 = vpop.f32.mrb[0].mxu0
        %1029 = vdwg.mxu0
        %v1030 = vrcp.pop %v980
        %v1031 = vmul.f32 %v1025, %v1030
        %1032 = vrot.lane.b32.xlu0 %v257, 100
        %v1033 = vpop.permute.xlu0 %1032
        %1034 = vrot.lane.b32.xlu0 %v258, 68
        %v1035 = vpop.permute.xlu0 %1034
        %v1037 = vsel %vm262, %v1033, 0
        %v1040 = vsel %vm262, %v1035, 0
        %1042 = vmatprep.subr.bf16.mxu0 0
        %1043 = vmatpush1.bf16.xpose.msra.mxu0 %v1040
        %1044 = vmatprep.subr.bf16.mxu0 0
        %1045 = vmatpush1.bf16.xpose.msra.mxu0 0
        %1046 = vmatprep.subr.bf16.mxu0 0
        %1047 = vmatpush1.bf16.xpose.msra.mxu0 0
        %1048 = vmatprep.subr.bf16.mxu0 0
        %1049 = vmatpush1.bf16.xpose.msra.mxu0 0
        %1050 = vmatprep.subr.bf16.mxu0 0
        %1051 = vmatpush1.bf16.xpose.msra.mxu0 0
        %1052 = vmatprep.subr.bf16.mxu0 0
        %1053 = vmatpush1.bf16.xpose.msra.mxu0 0
        %1054 = vmatprep.subr.bf16.mxu0 0
        %1055 = vmatpush1.bf16.xpose.msra.mxu0 0
        %1056 = vmatprep.subr.bf16.mxu0 0
        %1057 = vmatpush1.bf16.xpose.msra.mxu0 0
        %1058 = vmatprep.subr.bf16.mxu0 0
        %1059 = vmatpush1.bf16.xpose.msra.mxu0 0
        %1060 = vmatprep.subr.bf16.mxu0 0
        %1061 = vmatpush1.bf16.xpose.msra.mxu0 0
        %1062 = vmatprep.subr.bf16.mxu0 0
        %1063 = vmatpush1.bf16.xpose.msra.mxu0 0
        %1064 = vmatprep.subr.bf16.mxu0 0
        %1065 = vmatpush1.bf16.xpose.msra.mxu0 0
        %1066 = vmatprep.subr.bf16.mxu0 0
        %1067 = vmatpush1.bf16.xpose.msra.mxu0 0
        %1068 = vmatprep.subr.bf16.mxu0 0
        %1069 = vmatpush1.bf16.xpose.msra.mxu0 0
        %1070 = vmatprep.subr.bf16.mxu0 0
        %1071 = vmatpush1.bf16.xpose.msra.mxu0 0
        %1072 = vmatprep.subr.bf16.mxu0 0
        %1073 = vmatpush1.bf16.xpose.msra.mxu0 0
        %1074 = vmatprep.mubr.bf16.mxu0 0
        %1075 = vmatmul.mubr.bf16.gmra.mrb[0].mxu0 %v1037
        %v1076 = vpop.f32.mrb[0].mxu0
        %v1077 = vadd.f32 0.0, %v1076
        %v1078 = vpop.f32.mrb[0].mxu0
        %v1079 = vpop.f32.mrb[0].mxu0
        %v1080 = vpop.f32.mrb[0].mxu0
        %1081 = vdwg.mxu0
        %v1082 = vsel %vm309, %v1077, -inf
        %1083 = vmax.xlane.f32.xlu0 %v1082
        %v1084 = vpop.xlane.xlu0 %1083
        %v1085 = vsub.f32 %v1077, %v1084
        %v1086 = vmul.f32 %v1085, 1.442695
        %v1087 = vpow.pop %v1086
        %v1088 = vsel %vm309, %v1087, 0.0
        %1089 = vadd.xlane.f32.xlu0 %v1088
        %v1090 = vpop.xlane.xlu0 %1089
        %v1091 = vpack.c.bf16 %v1087, %v1087
        %1092 = vrot.lane.b32.xlu0 %v258, 36
        %v1093 = vpop.permute.xlu0 %1092
        %v1095 = vsel %vm309, %v1091, 0
        %v1098 = vsel %vm325, %v1093, 0
        %1100 = vmatprep.subr.bf16.mxu0 0
        %1101 = vmatpush1.bf16.msra.mxu0 %v1098
        %1102 = vmatprep.subr.bf16.mxu0 0
        %1103 = vmatpush1.bf16.msra.mxu0 0
        %1104 = vmatprep.subr.bf16.mxu0 0
        %1105 = vmatpush1.bf16.msra.mxu0 0
        %1106 = vmatprep.subr.bf16.mxu0 0
        %1107 = vmatpush1.bf16.msra.mxu0 0
        %1108 = vmatprep.subr.bf16.mxu0 0
        %1109 = vmatpush1.bf16.msra.mxu0 0
        %1110 = vmatprep.subr.bf16.mxu0 0
        %1111 = vmatpush1.bf16.msra.mxu0 0
        %1112 = vmatprep.subr.bf16.mxu0 0
        %1113 = vmatpush1.bf16.msra.mxu0 0
        %1114 = vmatprep.subr.bf16.mxu0 0
        %1115 = vmatpush1.bf16.msra.mxu0 0
        %1116 = vmatprep.subr.bf16.mxu0 0
        %1117 = vmatpush1.bf16.msra.mxu0 0
        %1118 = vmatprep.subr.bf16.mxu0 0
        %1119 = vmatpush1.bf16.msra.mxu0 0
        %1120 = vmatprep.subr.bf16.mxu0 0
        %1121 = vmatpush1.bf16.msra.mxu0 0
        %1122 = vmatprep.subr.bf16.mxu0 0
        %1123 = vmatpush1.bf16.msra.mxu0 0
        %1124 = vmatprep.subr.bf16.mxu0 0
        %1125 = vmatpush1.bf16.msra.mxu0 0
        %1126 = vmatprep.subr.bf16.mxu0 0
        %1127 = vmatpush1.bf16.msra.mxu0 0
        %1128 = vmatprep.subr.bf16.mxu0 0
        %1129 = vmatpush1.bf16.msra.mxu0 0
        %1130 = vmatprep.subr.bf16.mxu0 0
        %1131 = vmatpush1.bf16.msra.mxu0 0
        %1132 = vmatprep.mubr.bf16.mxu0 0
        %1133 = vmatmul.mubr.bf16.gmra.mrb[0].mxu0 %v1095
        %v1134 = vpop.f32.mrb[0].mxu0
        %v1135 = vadd.f32 0.0, %v1134
        %v1136 = vpop.f32.mrb[0].mxu0
        %v1137 = vpop.f32.mrb[0].mxu0
        %v1138 = vpop.f32.mrb[0].mxu0
        %1139 = vdwg.mxu0
        %v1140 = vrcp.pop %v1090
        %v1141 = vmul.f32 %v1135, %v1140
        %1143 = vrot.lane.b32.xlu0 %v481, 4
        %v1144 = vpop.permute.xlu0 %1143
        %1147 = vrot.lane.b32.xlu0 %v591, 8
        %v1148 = vpop.permute.xlu0 %1147
        %1151 = vrot.lane.b32.xlu0 %v701, 12
        %v1152 = vpop.permute.xlu0 %1151
        %1155 = vrot.lane.b32.xlu0 %v811, 16
        %v1156 = vpop.permute.xlu0 %1155
        %1159 = vrot.lane.b32.xlu0 %v921, 20
        %v1160 = vpop.permute.xlu0 %1159
        %1163 = vrot.lane.b32.xlu0 %v1031, 24
        %v1164 = vpop.permute.xlu0 %1163
        %1167 = vrot.lane.b32.xlu0 %v1141, 28
        %v1168 = vpop.permute.xlu0 %1167
        %v1170 = vsel %vm262, %v370, %v1144
        %v1171 = vsel %vm309, %v1170, %v1148
        %vm1172 = vcmask 97280
        %v1173 = vsel %vm1172, %v1171, %v1152
        %vm1174 = vcmask 130048
        %v1175 = vsel %vm1174, %v1173, %v1156
        %vm1176 = vcmask 162816
        %v1177 = vsel %vm1176, %v1175, %v1160
        %vm1178 = vcmask 195584
        %v1179 = vsel %vm1178, %v1177, %v1164
        %vm1180 = vcmask 228352
        %v1181 = vsel %vm1180, %v1179, %v1168
        %v1182 = vpack.c.bf16 %v1181, %v1181
        %v1183 = vld [vmem:[%s2] sm:$0xf]
        %v1184 = vld [vmem:[%s2 + $0x4] sm:$0xf]
        %v1185 = vld [vmem:[%s2 + $0x8] sm:$0xf]
        %v1186 = vld [vmem:[%s2 + $0xc] sm:$0xf]
        %v1187 = vld [vmem:[%s3] sm:$0x1]
        %v1189 = vlaneseq
        %v1190 = vshrl.u32 %v1189, 7
        %v1191 = vsub.s32 0, %v1190
        %v1192 = vrot.slane %v1187, %v1191
        %v1198 = vunpack.c.l.b16 %v1183
        %v1199 = vunpack.c.l.b16 %v1184
        %v1200 = vunpack.c.l.b16 %v1185
        %v1201 = vunpack.c.l.b16 %v1186
        %v1202 = vpack.c.b16 %v1199, %v1198
        %v1203 = vpack.c.b16 %v1201, %v1200
        %v1207 = vsel %vm212, %v1182, 0
        %1209 = vmatprep.subr.bf16.mxu0 0
        %1210 = vmatpush1.bf16.msra.mxu0 %v1202
        %1211 = vmatprep.subr.bf16.mxu0 0
        %1212 = vmatpush1.bf16.msra.mxu0 %v1203
        %1213 = vmatprep.subr.bf16.mxu0 0
        %1214 = vmatpush1.bf16.msra.mxu0 0
        %1215 = vmatprep.subr.bf16.mxu0 0
        %1216 = vmatpush1.bf16.msra.mxu0 0
        %1217 = vmatprep.subr.bf16.mxu0 0
        %1218 = vmatpush1.bf16.msra.mxu0 0
        %1219 = vmatprep.subr.bf16.mxu0 0
        %1220 = vmatpush1.bf16.msra.mxu0 0
        %1221 = vmatprep.subr.bf16.mxu0 0
        %1222 = vmatpush1.bf16.msra.mxu0 0
        %1223 = vmatprep.subr.bf16.mxu0 0
        %1224 = vmatpush1.bf16.msra.mxu0 0
        %1225 = vmatprep.subr.bf16.mxu0 0
        %1226 = vmatpush1.bf16.msra.mxu0 0
        %1227 = vmatprep.subr.bf16.mxu0 0
        %1228 = vmatpush1.bf16.msra.mxu0 0
        %1229 = vmatprep.subr.bf16.mxu0 0
        %1230 = vmatpush1.bf16.msra.mxu0 0
        %1231 = vmatprep.subr.bf16.mxu0 0
        %1232 = vmatpush1.bf16.msra.mxu0 0
        %1233 = vmatprep.subr.bf16.mxu0 0
        %1234 = vmatpush1.bf16.msra.mxu0 0
        %1235 = vmatprep.subr.bf16.mxu0 0
        %1236 = vmatpush1.bf16.msra.mxu0 0
        %1237 = vmatprep.subr.bf16.mxu0 0
        %1238 = vmatpush1.bf16.msra.mxu0 0
        %1239 = vmatprep.subr.bf16.mxu0 0
        %1240 = vmatpush1.bf16.msra.mxu0 0
        %1241 = vmatprep.mubr.bf16.mxu0 0
        %1242 = vmatmul.mubr.bf16.gmra.mrb[0].mxu0 %v1207
        %v1243 = vpop.f32.mrb[0].mxu0
        %v1244 = vadd.f32 %v1192, %v1243
        %v1245 = vpop.f32.mrb[0].mxu0
        %v1246 = vpop.f32.mrb[0].mxu0
        %v1247 = vpop.f32.mrb[0].mxu0
        %1248 = vdwg.mxu0
        %1249 = vst.msk [vmem:[%s188] sm:$0xff] %vm212, %v1244
        %s1250 = sand.u32 %s115, 1
        %s1251 = scalar_lea.sflag [#allocation3], %s1250
        %s1252 = sand.u32 %s115, 1
        %s1253 = smul.addr %s1252, 8
        %s1254 = scalar_lea.vmem [#allocation2], %s1253
        // Predicated region
        $region37: #{attention_forward.1} parent=35 // pred_check
          %p1255 = pneg %p125
        $region38: #{attention_forward.1} parent=35 // pred_check_branch
          %1257 = sbr.rel (%p1255) target = $region40
        $region39: #{attention_forward.1} parent=35 // pred_region
          %s1259 = ssub.s32 128, 128
          %1260 = vsyncadd %s1251, %s1259
          %s1261 = smul.addr %s18, 128
          %s1262 = scalar_lea.hbm %s4, %s1261
          %s1264 = sshll.u32 %s1254, 4
          %s1265 = int_to_ptr.vmem [resolvable:$true] %s1264
          %1267 = dma.vmem_to_hbm [thread:$0]  %s1265, 128, %s1262, %s1251
        $region40: #{attention_forward.1} parent=35 // pred_fallthru
          _
      $region36: #{attention_forward.1} parent=5 // pred_fallthru
        _
      %p1268 = scmp.le.s32.totalorder 2, %s13
      // Predicated region
      $region41: #{attention_forward.1} parent=5 // pred_check
        %p1269 = pneg %p1268
      $region42: #{attention_forward.1} parent=5 // pred_check_branch
        %1271 = sbr.rel (%p1269) target = $region44
      $region43: #{attention_forward.1} parent=5 // pred_region
        %s1272 = ssub.s32 %s13, 2
        // Predicated region
        $region45: #{attention_forward.1} parent=43 // pred_check
          %p1273 = pneg %p131
        $region46: #{attention_forward.1} parent=43 // pred_check_branch
          %1275 = sbr.rel (%p1273) target = $region48
        $region47: #{attention_forward.1} parent=43 // pred_region
          %s1276 = sand.u32 %s116, 1
          %s1277 = scalar_lea.sflag [#allocation3], %s1276
          %s1278 = sand.u32 %s116, 1
          %s1279 = smul.addr %s1278, 8
          %s1280 = scalar_lea.vmem [#allocation2], %s1279
          %1281 = dma.done %s1277, 128
        $region48: #{attention_forward.1} parent=43 // pred_fallthru
          _
      $region44: #{attention_forward.1} parent=5 // pred_fallthru
        _
    $region6: #{attention_forward.1} parent=1 // loop_footer
      %s17 = sadd.s32 1, %s13
    $region7: #{attention_forward.1} parent=1 // loop_footer_branch
      %12 = sbr.rel target = $region3
    $region8: #{attention_forward.1} parent=1 // loop_exit
      _
    %1282 = vsyncpa [#allocation3], 1
    %s1283 = scalar_lea.sflag [#allocation3], 1
    %1284 = vsyncpa %s1283, 1

</llo_original>
